<compile_context>
chip_gen: v6e
topology: v6e:2x2x1
jax: 0.10.0
libtpu: 0.0.40
codegen_flags: <defaults>
</compile_context>

<pallas_src>
import numpy as np
import jax
import jax.numpy as jnp
from jax import lax
from jax.experimental import pallas as pl
from jax.experimental.pallas import tpu as pltpu


def _round_up(x, m):
    return (x + m - 1) // m * m


# ----------------------------- Pallas kernels ------------------------------

def _lstm_stack_kernel(x_ref, w_ref, b_ref, out_ref, act_ref):
    """All LSTM layers + full time recurrence in one invocation.

    grid axis 0 = layer index (strictly sequential: layer l's output feeds
    layer l+1 through the resident act_ref scratch).
      x_ref   (T, Bp, Dp)      padded [features; embeddings] (layer-0 input)
      w_ref   (1, Dp+Hp, 4Hp)  this layer's fused [W_ih; W_hh]^T (zero-padded)
      b_ref   (1, 1, 4Hp)      this layer's combined bias (zero-padded)
      out_ref (T, Bp, Hp)      last layer's hidden sequence
      act_ref (T, Bp, Dp)      inter-layer activations, VMEM resident
    """
    layer = pl.program_id(0)
    T, Bp, Dp = act_ref.shape
    Hp = out_ref.shape[-1]

    @pl.when(layer == 0)
    def _():
        act_ref[...] = x_ref[...]

    w = w_ref[0]                      # (Dp+Hp, 4Hp)
    b = b_ref[0]                      # (1, 4Hp)

    def step(t, carry):
        h, c = carry                                       # (Bp, Hp) each
        x_t = act_ref[t]                                   # (Bp, Dp)
        xin = jnp.concatenate([x_t, h], axis=-1)           # (Bp, Dp+Hp)
        gates = jnp.dot(xin, w, preferred_element_type=jnp.float32) + b
        # gate slices are lane-aligned: Hp is a multiple of 128
        i_g = jax.nn.sigmoid(gates[:, 0 * Hp:1 * Hp])
        f_g = jax.nn.sigmoid(gates[:, 1 * Hp:2 * Hp])
        g_g = jnp.tanh(gates[:, 2 * Hp:3 * Hp])
        o_g = jax.nn.sigmoid(gates[:, 3 * Hp:4 * Hp])
        c_new = f_g * c + i_g * g_g
        h_new = o_g * jnp.tanh(c_new)
        if Dp > Hp:
            h_store = jnp.concatenate(
                [h_new, jnp.zeros((Bp, Dp - Hp), h_new.dtype)], axis=-1)
        else:
            h_store = h_new
        # in-place: slot t of act_ref was already consumed above
        act_ref[t] = h_store
        return (h_new, c_new)

    zeros = jnp.zeros((Bp, Hp), jnp.float32)
    lax.fori_loop(0, T, step, (zeros, zeros), unroll=(T <= 16))

    @pl.when(layer == pl.num_programs(0) - 1)
    def _():
        # one lane-dense slab write of the whole (T, Bp, Hp) output
        out_ref[...] = act_ref[...][:, :, :Hp]


def _linear_kernel(x_ref, w_ref, b_ref, o_ref):
    o_ref[...] = (jnp.dot(x_ref[...], w_ref[...],
                          preferred_element_type=jnp.float32)
                  + b_ref[...]).astype(o_ref.dtype)


# ------------------------------ wrappers ------------------------------------

def lstm_stack(x_p, w_stack, b_stack):
    """x_p: (T, Bp, Dp) f32.  Returns last-layer hiddens (T, Bp, Hp)."""
    T, Bp, Dp = x_p.shape
    L, Kp, H4 = w_stack.shape
    Hp = H4 // 4
    return pl.pallas_call(
        _lstm_stack_kernel,
        out_shape=jax.ShapeDtypeStruct((T, Bp, Hp), jnp.float32),
        grid_spec=pltpu.PrefetchScalarGridSpec(
            num_scalar_prefetch=0,
            grid=(L,),
            in_specs=[
                pl.BlockSpec((T, Bp, Dp), lambda l: (0, 0, 0)),   # loaded once
                pl.BlockSpec((1, Kp, H4), lambda l: (l, 0, 0)),   # per-layer W
                pl.BlockSpec((1, 1, H4), lambda l: (l, 0, 0)),    # per-layer b
            ],
            out_specs=pl.BlockSpec((T, Bp, Hp), lambda l: (0, 0, 0)),
            scratch_shapes=[pltpu.VMEM((T, Bp, Dp), jnp.float32)],
        ),
        compiler_params=pltpu.CompilerParams(
            dimension_semantics=("arbitrary",)),
    )(x_p, w_stack, b_stack)


def linear(x, w_t, b_row, *, bn_max=256, bv_max=1024):
    """x: (N, K) f32, w_t: (K, V) f32, b_row: (1, V) f32 -> (N, V) f32.

    Tiled over (N, V) so large vocabularies never require the whole weight
    resident in VMEM; pads N to sublane and V to lane multiples.
    """
    N, K = x.shape
    V = w_t.shape[1]
    N8 = _round_up(N, 8)
    bn = N8 if N8 <= bn_max else bn_max
    Np = _round_up(N8, bn)
    V128 = _round_up(V, 128)
    bv = V128 if V128 <= bv_max else bv_max
    Vp = _round_up(V128, bv)
    if Np != N:
        x = jnp.pad(x, ((0, Np - N), (0, 0)))
    if Vp != V:
        w_t = jnp.pad(w_t, ((0, 0), (0, Vp - V)))
        b_row = jnp.pad(b_row, ((0, 0), (0, Vp - V)))
    out = pl.pallas_call(
        _linear_kernel,
        out_shape=jax.ShapeDtypeStruct((Np, Vp), jnp.float32),
        grid_spec=pltpu.PrefetchScalarGridSpec(
            num_scalar_prefetch=0,
            grid=(Np // bn, Vp // bv),
            in_specs=[
                pl.BlockSpec((bn, K), lambda i, j: (i, 0)),
                pl.BlockSpec((K, bv), lambda i, j: (0, j)),
                pl.BlockSpec((1, bv), lambda i, j: (0, j)),
            ],
            out_specs=pl.BlockSpec((bn, bv), lambda i, j: (i, j)),
        ),
        compiler_params=pltpu.CompilerParams(
            dimension_semantics=("parallel", "parallel")),
    )(x, w_t, b_row)
    return out[:N, :V]


# ------------------------ one-time parameter prep ----------------------------

def prep_params(params, embed_size, hidden_size):
    """Hoists transposes / bias sums / padding out of the forward hot path."""
    E, H = embed_size, hidden_size
    L = len(params["lstm"])
    Hp = _round_up(H, 128)                  # lane-aligned gates & outputs
    Dp = max(_round_up(E, 128), Hp)         # common inter-layer feature width
    Kp = Dp + Hp
    W = np.zeros((L, Kp, 4 * Hp), np.float32)
    Bsum = np.zeros((L, 1, 4 * Hp), np.float32)
    for l, layer in enumerate(params["lstm"]):
        in_sz = E if l == 0 else H
        wih_t = np.asarray(layer["w_ih"], np.float32).T        # (in_sz, 4H)
        whh_t = np.asarray(layer["w_hh"], np.float32).T        # (H, 4H)
        bias = np.asarray(layer["b_ih"], np.float32) + np.asarray(
            layer["b_hh"], np.float32)                         # (4H,)
        for g in range(4):                                     # i, f, g, o
            W[l, :in_sz, g * Hp:g * Hp + H] = wih_t[:, g * H:(g + 1) * H]
            W[l, Dp:Dp + H, g * Hp:g * Hp + H] = whh_t[:, g * H:(g + 1) * H]
            Bsum[l, 0, g * Hp:g * Hp + H] = bias[g * H:(g + 1) * H]
    V = params["lin_w"].shape[0]
    lin_wT = np.zeros((Hp, V), np.float32)
    lin_wT[:H, :] = np.asarray(params["lin_w"], np.float32).T
    lin_b = np.asarray(params["lin_b"], np.float32).reshape(1, V)
    return {
        "emb": params["emb"],
        "W": jnp.asarray(W),
        "bias": jnp.asarray(Bsum),
        "lin_wT": jnp.asarray(lin_wT),
        "lin_b": jnp.asarray(lin_b),
        "Hp": Hp, "Dp": Dp,
    }


# --------------------------------- forward -----------------------------------

def decoder_rnn_forward(prepped, features, captions, lengths):
    """Replicates DecoderRNN.forward.

    features: (B, E) f32, captions: (B, T-1) int32,
    lengths: python list of ints, sorted descending, each <= T = cap_len + 1.
    Returns packed logits of shape (sum(lengths), vocab_size).
    """
    B, E = features.shape
    Hp, Dp = prepped["Hp"], prepped["Dp"]
    # 1) embedding lookup + prepend image features (glue)
    emb = jnp.take(prepped["emb"], captions, axis=0)            # (B, T-1, E)
    x = jnp.concatenate([features[:, None, :], emb], axis=1)    # (B, T, E)
    T = x.shape[1]
    # 2) time-major, pad batch to sublane multiple and features to Dp lanes
    Bp = _round_up(B, 8)
    x_tbe = jnp.transpose(x, (1, 0, 2)).astype(jnp.float32)     # (T, B, E)
    x_p = jnp.zeros((T, Bp, Dp), jnp.float32).at[:, :B, :E].set(x_tbe)
    # 3) fused multi-layer LSTM (single kernel)
    h_p = lstm_stack(x_p, prepped["W"], prepped["bias"])        # (T, Bp, Hp)
    # 4) pack_padded_sequence ordering (batch_first, enforce_sorted=True):
    #    time-major, only active batches each step (static indices).
    pack_idx = np.array([t * Bp + b for t in range(T) for b in range(B)
                         if lengths[b] > t], dtype=np.int32)
    packed_h = h_p.reshape(T * Bp, Hp)[jnp.asarray(pack_idx)]   # (N, Hp)
    # 5) tiled vocab projection (padded hidden lanes hit zero weight rows)
    return linear(packed_h, prepped["lin_wT"], prepped["lin_b"])  # (N, V)


# -------------------------- deterministic params -----------------------------

def init_params(key, embed_size, hidden_size, vocab_size, num_layers):
    ks = jax.random.split(key, 3 + 4 * num_layers)
    std = 1.0 / np.sqrt(hidden_size)
    params = {
        "emb": jax.random.normal(ks[0], (vocab_size, embed_size), jnp.float32),
        "lin_w": jax.random.uniform(ks[1], (vocab_size, hidden_size),
                                    jnp.float32, -std, std),
        "lin_b": jax.random.uniform(ks[2], (vocab_size,), jnp.float32, -std, std),
        "lstm": [],
    }
    for l in range(num_layers):
        in_sz = embed_size if l == 0 else hidden_size
        k0, k1, k2, k3 = ks[3 + 4 * l: 7 + 4 * l]
        params["lstm"].append({
            "w_ih": jax.random.uniform(k0, (4 * hidden_size, in_sz),
                                       jnp.float32, -std, std),
            "w_hh": jax.random.uniform(k1, (4 * hidden_size, hidden_size),
                                       jnp.float32, -std, std),
            "b_ih": jax.random.uniform(k2, (4 * hidden_size,), jnp.float32, -std, std),
            "b_hh": jax.random.uniform(k3, (4 * hidden_size,), jnp.float32, -std, std),
        })
    return params


# ----------------------------- pure-JAX reference ----------------------------

def reference_forward(params, features, captions, lengths):
    emb = jnp.take(params["emb"], captions, axis=0)
    x = jnp.concatenate([features[:, None, :], emb], axis=1).astype(jnp.float32)
    B, T, _ = x.shape
    h_seq = jnp.transpose(x, (1, 0, 2))
    for layer in params["lstm"]:
        H = layer["w_hh"].shape[1]
        wih, whh = layer["w_ih"].T, layer["w_hh"].T
        bias = layer["b_ih"] + layer["b_hh"]

        def step(carry, xt):
            h, c = carry
            g = xt @ wih + h @ whh + bias
            i = jax.nn.sigmoid(g[:, 0 * H:1 * H])
            f = jax.nn.sigmoid(g[:, 1 * H:2 * H])
            gg = jnp.tanh(g[:, 2 * H:3 * H])
            o = jax.nn.sigmoid(g[:, 3 * H:4 * H])
            c = f * c + i * gg
            h = o * jnp.tanh(c)
            return (h, c), h

        init = (jnp.zeros((B, H), jnp.float32), jnp.zeros((B, H), jnp.float32))
        _, h_seq = lax.scan(step, init, h_seq)
    pack_idx = [t * B + b for t in range(T) for b in range(B) if lengths[b] > t]
    packed = h_seq.reshape(T * B, -1)[jnp.asarray(pack_idx)]
    return packed @ params["lin_w"].T + params["lin_b"]


# ---------------------------------- main -------------------------------------

if __name__ == "__main__":
    embed_size, hidden_size, vocab_size, num_layers = 32, 32, 64, 2
    B, cap_len = 2, 7            # total seq T = cap_len + 1 = 8
    lengths = [8, 6]             # sorted descending, as pack_padded_sequence requires

    key = jax.random.PRNGKey(0)
    kp, kf, kc = jax.random.split(key, 3)
    params = init_params(kp, embed_size, hidden_size, vocab_size, num_layers)
    features = jax.random.normal(kf, (B, embed_size), jnp.float32)
    captions = jax.random.randint(kc, (B, cap_len), 0, vocab_size, jnp.int32)

    prepped = prep_params(params, embed_size, hidden_size)
    out = decoder_rnn_forward(prepped, features, captions, lengths)
    out = jax.block_until_ready(out)

    ref = jax.block_until_ready(reference_forward(params, features, captions, lengths))
    assert out.shape == (sum(lengths), vocab_size), out.shape
    np.testing.assert_allclose(np.asarray(out), np.asarray(ref), rtol=2e-4, atol=2e-4)

    print("KERNEL_OK")
</pallas_src>

<mosaic_0001>
module attributes {stable_mosaic.version = 11 : i64} {
  func.func @_lstm_stack_kernel(%arg0: i32, %arg1: memref<8x8x128xf32, #tpu.memory_space<vmem>>, %arg2: memref<1x256x512xf32, #tpu.memory_space<vmem>>, %arg3: memref<1x1x512xf32, #tpu.memory_space<vmem>>, %arg4: memref<8x8x128xf32, #tpu.memory_space<vmem>>, %arg5: memref<8x8x128xf32, #tpu.memory_space<vmem>>) attributes {dimension_semantics = [#tpu.dimension_semantics<arbitrary>], iteration_bounds = array<i64: 2>, scalar_prefetch = 0 : i64, scratch_operands = 1 : i64, tpu.core_type = #tpu.core_type<tc>, window_params = [{pipeline_mode = #tpu.pipeline_mode<synchronous>, transform_indices = @transform_0, window_bounds = array<i64: 8, 8, 128>}, {transform_indices = @transform_1, window_bounds = array<i64: 1, 256, 512>}, {transform_indices = @transform_2, window_bounds = array<i64: 1, 1, 512>}, {pipeline_mode = #tpu.pipeline_mode<synchronous>, transform_indices = @transform_3, window_bounds = array<i64: 8, 8, 128>}]} {
    %c0_i32 = arith.constant 0 : i32
    %0 = arith.cmpi eq, %arg0, %c0_i32 : i32
    %1 = arith.extui %0 : i1 to i32
    %c0_i32_0 = arith.constant 0 : i32
    %2 = arith.cmpi ne, %1, %c0_i32_0 : i32
    scf.if %2 {
      %c0_73 = arith.constant 0 : index
      %c0_74 = arith.constant 0 : index
      %c0_75 = arith.constant 0 : index
      %299 = vector.load %arg1[%c0_73, %c0_74, %c0_75] : memref<8x8x128xf32, #tpu.memory_space<vmem>>, vector<8x8x128xf32>
      %c0_76 = arith.constant 0 : index
      %c0_77 = arith.constant 0 : index
      %c0_78 = arith.constant 0 : index
      %300 = vector.load %arg5[%c0_76, %c0_77, %c0_78] : memref<8x8x128xf32, #tpu.memory_space<vmem>>, vector<8x8x128xf32>
      tpu.vector_store %arg5[%c0_76, %c0_77, %c0_78], %299 {strides = array<i32>} : memref<8x8x128xf32, #tpu.memory_space<vmem>>, vector<8x8x128xf32>,
    } else {
    }
    %c0 = arith.constant 0 : index
    %c0_1 = arith.constant 0 : index
    %c0_2 = arith.constant 0 : index
    %3 = vector.load %arg2[%c0, %c0_1, %c0_2] : memref<1x256x512xf32, #tpu.memory_space<vmem>>, vector<1x256x512xf32>
    %4 = vector.shape_cast %3 : vector<1x256x512xf32> to vector<256x512xf32>
    %c0_3 = arith.constant 0 : index
    %c0_4 = arith.constant 0 : index
    %c0_5 = arith.constant 0 : index
    %5 = vector.load %arg3[%c0_3, %c0_4, %c0_5] : memref<1x1x512xf32, #tpu.memory_space<vmem>>, vector<1x1x512xf32>
    %6 = vector.shape_cast %5 : vector<1x1x512xf32> to vector<1x512xf32>
    %cst = arith.constant 0.000000e+00 : f32
    %7 = vector.broadcast %cst : f32 to vector<8x128xf32>
    %c0_i32_6 = arith.constant 0 : i32
    %8 = arith.index_cast %c0_i32_6 : i32 to index
    %c0_7 = arith.constant 0 : index
    %c0_8 = arith.constant 0 : index
    %9 = vector.load %arg5[%8, %c0_7, %c0_8] : memref<8x8x128xf32, #tpu.memory_space<vmem>>, vector<1x8x128xf32>
    %10 = vector.shape_cast %9 : vector<1x8x128xf32> to vector<8x128xf32>
    %11 = tpu.concatenate %10, %7 in 1 : vector<8x128xf32>, vector<8x128xf32> -> vector<8x256xf32>
    %cst_9 = arith.constant dense<0.000000e+00> : vector<8x512xf32>
    %12 = tpu.matmul %11, %4, %cst_9 {dimension_numbers = #tpu.dot_dimension_numbers<[1], [0], [0], [1], [0, 0, 1, 1], [], []>} : vector<8x256xf32>, vector<256x512xf32>, vector<8x512xf32> -> vector<8x512xf32>
    %13 = vector.broadcast %6 : vector<1x512xf32> to vector<8x512xf32>
    %14 = arith.addf %12, %13 : vector<8x512xf32>
    %15 = vector.extract_strided_slice %14 {offsets = [0, 0], sizes = [8, 128], strides = [1, 1]} : vector<8x512xf32> to vector<8x128xf32>
    %16 = arith.negf %15 : vector<8x128xf32>
    %17 = math.exp %16 : vector<8x128xf32>
    %cst_10 = arith.constant 1.000000e+00 : f32
    %18 = vector.broadcast %cst_10 : f32 to vector<8x128xf32>
    %19 = arith.addf %18, %17 : vector<8x128xf32>
    %20 = arith.divf %18, %19 : vector<8x128xf32>
    %21 = vector.extract_strided_slice %14 {offsets = [0, 128], sizes = [8, 128], strides = [1, 1]} : vector<8x512xf32> to vector<8x128xf32>
    %22 = arith.negf %21 : vector<8x128xf32>
    %23 = math.exp %22 : vector<8x128xf32>
    %cst_11 = arith.constant 1.000000e+00 : f32
    %24 = vector.broadcast %cst_11 : f32 to vector<8x128xf32>
    %25 = arith.addf %24, %23 : vector<8x128xf32>
    %26 = arith.divf %24, %25 : vector<8x128xf32>
    %27 = vector.extract_strided_slice %14 {offsets = [0, 256], sizes = [8, 128], strides = [1, 1]} : vector<8x512xf32> to vector<8x128xf32>
    %28 = math.tanh %27 : vector<8x128xf32>
    %29 = vector.extract_strided_slice %14 {offsets = [0, 384], sizes = [8, 128], strides = [1, 1]} : vector<8x512xf32> to vector<8x128xf32>
    %30 = arith.negf %29 : vector<8x128xf32>
    %31 = math.exp %30 : vector<8x128xf32>
    %cst_12 = arith.constant 1.000000e+00 : f32
    %32 = vector.broadcast %cst_12 : f32 to vector<8x128xf32>
    %33 = arith.addf %32, %31 : vector<8x128xf32>
    %34 = arith.divf %32, %33 : vector<8x128xf32>
    %35 = arith.mulf %26, %7 : vector<8x128xf32>
    %36 = arith.mulf %20, %28 : vector<8x128xf32>
    %37 = arith.addf %35, %36 : vector<8x128xf32>
    %38 = math.tanh %37 : vector<8x128xf32>
    %39 = arith.mulf %34, %38 : vector<8x128xf32>
    %40 = arith.index_cast %c0_i32_6 : i32 to index
    %c0_13 = arith.constant 0 : index
    %c0_14 = arith.constant 0 : index
    %41 = vector.load %arg5[%40, %c0_13, %c0_14] : memref<8x8x128xf32, #tpu.memory_space<vmem>>, vector<1x8x128xf32>
    %42 = vector.shape_cast %41 : vector<1x8x128xf32> to vector<8x128xf32>
    %43 = vector.shape_cast %39 : vector<8x128xf32> to vector<1x8x128xf32>
    tpu.vector_store %arg5[%40, %c0_13, %c0_14], %43 {strides = array<i32>} : memref<8x8x128xf32, #tpu.memory_space<vmem>>, vector<1x8x128xf32>,
    %c1_i32 = arith.constant 1 : i32
    %44 = arith.index_cast %c1_i32 : i32 to index
    %c0_15 = arith.constant 0 : index
    %c0_16 = arith.constant 0 : index
    %45 = vector.load %arg5[%44, %c0_15, %c0_16] : memref<8x8x128xf32, #tpu.memory_space<vmem>>, vector<1x8x128xf32>
    %46 = vector.shape_cast %45 : vector<1x8x128xf32> to vector<8x128xf32>
    %47 = tpu.concatenate %46, %39 in 1 : vector<8x128xf32>, vector<8x128xf32> -> vector<8x256xf32>
    %cst_17 = arith.constant dense<0.000000e+00> : vector<8x512xf32>
    %48 = tpu.matmul %47, %4, %cst_17 {dimension_numbers = #tpu.dot_dimension_numbers<[1], [0], [0], [1], [0, 0, 1, 1], [], []>} : vector<8x256xf32>, vector<256x512xf32>, vector<8x512xf32> -> vector<8x512xf32>
    %49 = vector.broadcast %6 : vector<1x512xf32> to vector<8x512xf32>
    %50 = arith.addf %48, %49 : vector<8x512xf32>
    %51 = vector.extract_strided_slice %50 {offsets = [0, 0], sizes = [8, 128], strides = [1, 1]} : vector<8x512xf32> to vector<8x128xf32>
    %52 = arith.negf %51 : vector<8x128xf32>
    %53 = math.exp %52 : vector<8x128xf32>
    %cst_18 = arith.constant 1.000000e+00 : f32
    %54 = vector.broadcast %cst_18 : f32 to vector<8x128xf32>
    %55 = arith.addf %54, %53 : vector<8x128xf32>
    %56 = arith.divf %54, %55 : vector<8x128xf32>
    %57 = vector.extract_strided_slice %50 {offsets = [0, 128], sizes = [8, 128], strides = [1, 1]} : vector<8x512xf32> to vector<8x128xf32>
    %58 = arith.negf %57 : vector<8x128xf32>
    %59 = math.exp %58 : vector<8x128xf32>
    %cst_19 = arith.constant 1.000000e+00 : f32
    %60 = vector.broadcast %cst_19 : f32 to vector<8x128xf32>
    %61 = arith.addf %60, %59 : vector<8x128xf32>
    %62 = arith.divf %60, %61 : vector<8x128xf32>
    %63 = vector.extract_strided_slice %50 {offsets = [0, 256], sizes = [8, 128], strides = [1, 1]} : vector<8x512xf32> to vector<8x128xf32>
    %64 = math.tanh %63 : vector<8x128xf32>
    %65 = vector.extract_strided_slice %50 {offsets = [0, 384], sizes = [8, 128], strides = [1, 1]} : vector<8x512xf32> to vector<8x128xf32>
    %66 = arith.negf %65 : vector<8x128xf32>
    %67 = math.exp %66 : vector<8x128xf32>
    %cst_20 = arith.constant 1.000000e+00 : f32
    %68 = vector.broadcast %cst_20 : f32 to vector<8x128xf32>
    %69 = arith.addf %68, %67 : vector<8x128xf32>
    %70 = arith.divf %68, %69 : vector<8x128xf32>
    %71 = arith.mulf %62, %37 : vector<8x128xf32>
    %72 = arith.mulf %56, %64 : vector<8x128xf32>
    %73 = arith.addf %71, %72 : vector<8x128xf32>
    %74 = math.tanh %73 : vector<8x128xf32>
    %75 = arith.mulf %70, %74 : vector<8x128xf32>
    %76 = arith.index_cast %c1_i32 : i32 to index
    %c0_21 = arith.constant 0 : index
    %c0_22 = arith.constant 0 : index
    %77 = vector.load %arg5[%76, %c0_21, %c0_22] : memref<8x8x128xf32, #tpu.memory_space<vmem>>, vector<1x8x128xf32>
    %78 = vector.shape_cast %77 : vector<1x8x128xf32> to vector<8x128xf32>
    %79 = vector.shape_cast %75 : vector<8x128xf32> to vector<1x8x128xf32>
    tpu.vector_store %arg5[%76, %c0_21, %c0_22], %79 {strides = array<i32>} : memref<8x8x128xf32, #tpu.memory_space<vmem>>, vector<1x8x128xf32>,
    %c2_i32 = arith.constant 2 : i32
    %80 = arith.index_cast %c2_i32 : i32 to index
    %c0_23 = arith.constant 0 : index
    %c0_24 = arith.constant 0 : index
    %81 = vector.load %arg5[%80, %c0_23, %c0_24] : memref<8x8x128xf32, #tpu.memory_space<vmem>>, vector<1x8x128xf32>
    %82 = vector.shape_cast %81 : vector<1x8x128xf32> to vector<8x128xf32>
    %83 = tpu.concatenate %82, %75 in 1 : vector<8x128xf32>, vector<8x128xf32> -> vector<8x256xf32>
    %cst_25 = arith.constant dense<0.000000e+00> : vector<8x512xf32>
    %84 = tpu.matmul %83, %4, %cst_25 {dimension_numbers = #tpu.dot_dimension_numbers<[1], [0], [0], [1], [0, 0, 1, 1], [], []>} : vector<8x256xf32>, vector<256x512xf32>, vector<8x512xf32> -> vector<8x512xf32>
    %85 = vector.broadcast %6 : vector<1x512xf32> to vector<8x512xf32>
    %86 = arith.addf %84, %85 : vector<8x512xf32>
    %87 = vector.extract_strided_slice %86 {offsets = [0, 0], sizes = [8, 128], strides = [1, 1]} : vector<8x512xf32> to vector<8x128xf32>
    %88 = arith.negf %87 : vector<8x128xf32>
    %89 = math.exp %88 : vector<8x128xf32>
    %cst_26 = arith.constant 1.000000e+00 : f32
    %90 = vector.broadcast %cst_26 : f32 to vector<8x128xf32>
    %91 = arith.addf %90, %89 : vector<8x128xf32>
    %92 = arith.divf %90, %91 : vector<8x128xf32>
    %93 = vector.extract_strided_slice %86 {offsets = [0, 128], sizes = [8, 128], strides = [1, 1]} : vector<8x512xf32> to vector<8x128xf32>
    %94 = arith.negf %93 : vector<8x128xf32>
    %95 = math.exp %94 : vector<8x128xf32>
    %cst_27 = arith.constant 1.000000e+00 : f32
    %96 = vector.broadcast %cst_27 : f32 to vector<8x128xf32>
    %97 = arith.addf %96, %95 : vector<8x128xf32>
    %98 = arith.divf %96, %97 : vector<8x128xf32>
    %99 = vector.extract_strided_slice %86 {offsets = [0, 256], sizes = [8, 128], strides = [1, 1]} : vector<8x512xf32> to vector<8x128xf32>
    %100 = math.tanh %99 : vector<8x128xf32>
    %101 = vector.extract_strided_slice %86 {offsets = [0, 384], sizes = [8, 128], strides = [1, 1]} : vector<8x512xf32> to vector<8x128xf32>
    %102 = arith.negf %101 : vector<8x128xf32>
    %103 = math.exp %102 : vector<8x128xf32>
    %cst_28 = arith.constant 1.000000e+00 : f32
    %104 = vector.broadcast %cst_28 : f32 to vector<8x128xf32>
    %105 = arith.addf %104, %103 : vector<8x128xf32>
    %106 = arith.divf %104, %105 : vector<8x128xf32>
    %107 = arith.mulf %98, %73 : vector<8x128xf32>
    %108 = arith.mulf %92, %100 : vector<8x128xf32>
    %109 = arith.addf %107, %108 : vector<8x128xf32>
    %110 = math.tanh %109 : vector<8x128xf32>
    %111 = arith.mulf %106, %110 : vector<8x128xf32>
    %112 = arith.index_cast %c2_i32 : i32 to index
    %c0_29 = arith.constant 0 : index
    %c0_30 = arith.constant 0 : index
    %113 = vector.load %arg5[%112, %c0_29, %c0_30] : memref<8x8x128xf32, #tpu.memory_space<vmem>>, vector<1x8x128xf32>
    %114 = vector.shape_cast %113 : vector<1x8x128xf32> to vector<8x128xf32>
    %115 = vector.shape_cast %111 : vector<8x128xf32> to vector<1x8x128xf32>
    tpu.vector_store %arg5[%112, %c0_29, %c0_30], %115 {strides = array<i32>} : memref<8x8x128xf32, #tpu.memory_space<vmem>>, vector<1x8x128xf32>,
    %c3_i32 = arith.constant 3 : i32
    %116 = arith.index_cast %c3_i32 : i32 to index
    %c0_31 = arith.constant 0 : index
    %c0_32 = arith.constant 0 : index
    %117 = vector.load %arg5[%116, %c0_31, %c0_32] : memref<8x8x128xf32, #tpu.memory_space<vmem>>, vector<1x8x128xf32>
    %118 = vector.shape_cast %117 : vector<1x8x128xf32> to vector<8x128xf32>
    %119 = tpu.concatenate %118, %111 in 1 : vector<8x128xf32>, vector<8x128xf32> -> vector<8x256xf32>
    %cst_33 = arith.constant dense<0.000000e+00> : vector<8x512xf32>
    %120 = tpu.matmul %119, %4, %cst_33 {dimension_numbers = #tpu.dot_dimension_numbers<[1], [0], [0], [1], [0, 0, 1, 1], [], []>} : vector<8x256xf32>, vector<256x512xf32>, vector<8x512xf32> -> vector<8x512xf32>
    %121 = vector.broadcast %6 : vector<1x512xf32> to vector<8x512xf32>
    %122 = arith.addf %120, %121 : vector<8x512xf32>
    %123 = vector.extract_strided_slice %122 {offsets = [0, 0], sizes = [8, 128], strides = [1, 1]} : vector<8x512xf32> to vector<8x128xf32>
    %124 = arith.negf %123 : vector<8x128xf32>
    %125 = math.exp %124 : vector<8x128xf32>
    %cst_34 = arith.constant 1.000000e+00 : f32
    %126 = vector.broadcast %cst_34 : f32 to vector<8x128xf32>
    %127 = arith.addf %126, %125 : vector<8x128xf32>
    %128 = arith.divf %126, %127 : vector<8x128xf32>
    %129 = vector.extract_strided_slice %122 {offsets = [0, 128], sizes = [8, 128], strides = [1, 1]} : vector<8x512xf32> to vector<8x128xf32>
    %130 = arith.negf %129 : vector<8x128xf32>
    %131 = math.exp %130 : vector<8x128xf32>
    %cst_35 = arith.constant 1.000000e+00 : f32
    %132 = vector.broadcast %cst_35 : f32 to vector<8x128xf32>
    %133 = arith.addf %132, %131 : vector<8x128xf32>
    %134 = arith.divf %132, %133 : vector<8x128xf32>
    %135 = vector.extract_strided_slice %122 {offsets = [0, 256], sizes = [8, 128], strides = [1, 1]} : vector<8x512xf32> to vector<8x128xf32>
    %136 = math.tanh %135 : vector<8x128xf32>
    %137 = vector.extract_strided_slice %122 {offsets = [0, 384], sizes = [8, 128], strides = [1, 1]} : vector<8x512xf32> to vector<8x128xf32>
    %138 = arith.negf %137 : vector<8x128xf32>
    %139 = math.exp %138 : vector<8x128xf32>
    %cst_36 = arith.constant 1.000000e+00 : f32
    %140 = vector.broadcast %cst_36 : f32 to vector<8x128xf32>
    %141 = arith.addf %140, %139 : vector<8x128xf32>
    %142 = arith.divf %140, %141 : vector<8x128xf32>
    %143 = arith.mulf %134, %109 : vector<8x128xf32>
    %144 = arith.mulf %128, %136 : vector<8x128xf32>
    %145 = arith.addf %143, %144 : vector<8x128xf32>
    %146 = math.tanh %145 : vector<8x128xf32>
    %147 = arith.mulf %142, %146 : vector<8x128xf32>
    %148 = arith.index_cast %c3_i32 : i32 to index
    %c0_37 = arith.constant 0 : index
    %c0_38 = arith.constant 0 : index
    %149 = vector.load %arg5[%148, %c0_37, %c0_38] : memref<8x8x128xf32, #tpu.memory_space<vmem>>, vector<1x8x128xf32>
    %150 = vector.shape_cast %149 : vector<1x8x128xf32> to vector<8x128xf32>
    %151 = vector.shape_cast %147 : vector<8x128xf32> to vector<1x8x128xf32>
    tpu.vector_store %arg5[%148, %c0_37, %c0_38], %151 {strides = array<i32>} : memref<8x8x128xf32, #tpu.memory_space<vmem>>, vector<1x8x128xf32>,
    %c4_i32 = arith.constant 4 : i32
    %152 = arith.index_cast %c4_i32 : i32 to index
    %c0_39 = arith.constant 0 : index
    %c0_40 = arith.constant 0 : index
    %153 = vector.load %arg5[%152, %c0_39, %c0_40] : memref<8x8x128xf32, #tpu.memory_space<vmem>>, vector<1x8x128xf32>
    %154 = vector.shape_cast %153 : vector<1x8x128xf32> to vector<8x128xf32>
    %155 = tpu.concatenate %154, %147 in 1 : vector<8x128xf32>, vector<8x128xf32> -> vector<8x256xf32>
    %cst_41 = arith.constant dense<0.000000e+00> : vector<8x512xf32>
    %156 = tpu.matmul %155, %4, %cst_41 {dimension_numbers = #tpu.dot_dimension_numbers<[1], [0], [0], [1], [0, 0, 1, 1], [], []>} : vector<8x256xf32>, vector<256x512xf32>, vector<8x512xf32> -> vector<8x512xf32>
    %157 = vector.broadcast %6 : vector<1x512xf32> to vector<8x512xf32>
    %158 = arith.addf %156, %157 : vector<8x512xf32>
    %159 = vector.extract_strided_slice %158 {offsets = [0, 0], sizes = [8, 128], strides = [1, 1]} : vector<8x512xf32> to vector<8x128xf32>
    %160 = arith.negf %159 : vector<8x128xf32>
    %161 = math.exp %160 : vector<8x128xf32>
    %cst_42 = arith.constant 1.000000e+00 : f32
    %162 = vector.broadcast %cst_42 : f32 to vector<8x128xf32>
    %163 = arith.addf %162, %161 : vector<8x128xf32>
    %164 = arith.divf %162, %163 : vector<8x128xf32>
    %165 = vector.extract_strided_slice %158 {offsets = [0, 128], sizes = [8, 128], strides = [1, 1]} : vector<8x512xf32> to vector<8x128xf32>
    %166 = arith.negf %165 : vector<8x128xf32>
    %167 = math.exp %166 : vector<8x128xf32>
    %cst_43 = arith.constant 1.000000e+00 : f32
    %168 = vector.broadcast %cst_43 : f32 to vector<8x128xf32>
    %169 = arith.addf %168, %167 : vector<8x128xf32>
    %170 = arith.divf %168, %169 : vector<8x128xf32>
    %171 = vector.extract_strided_slice %158 {offsets = [0, 256], sizes = [8, 128], strides = [1, 1]} : vector<8x512xf32> to vector<8x128xf32>
    %172 = math.tanh %171 : vector<8x128xf32>
    %173 = vector.extract_strided_slice %158 {offsets = [0, 384], sizes = [8, 128], strides = [1, 1]} : vector<8x512xf32> to vector<8x128xf32>
    %174 = arith.negf %173 : vector<8x128xf32>
    %175 = math.exp %174 : vector<8x128xf32>
    %cst_44 = arith.constant 1.000000e+00 : f32
    %176 = vector.broadcast %cst_44 : f32 to vector<8x128xf32>
    %177 = arith.addf %176, %175 : vector<8x128xf32>
    %178 = arith.divf %176, %177 : vector<8x128xf32>
    %179 = arith.mulf %170, %145 : vector<8x128xf32>
    %180 = arith.mulf %164, %172 : vector<8x128xf32>
    %181 = arith.addf %179, %180 : vector<8x128xf32>
    %182 = math.tanh %181 : vector<8x128xf32>
    %183 = arith.mulf %178, %182 : vector<8x128xf32>
    %184 = arith.index_cast %c4_i32 : i32 to index
    %c0_45 = arith.constant 0 : index
    %c0_46 = arith.constant 0 : index
    %185 = vector.load %arg5[%184, %c0_45, %c0_46] : memref<8x8x128xf32, #tpu.memory_space<vmem>>, vector<1x8x128xf32>
    %186 = vector.shape_cast %185 : vector<1x8x128xf32> to vector<8x128xf32>
    %187 = vector.shape_cast %183 : vector<8x128xf32> to vector<1x8x128xf32>
    tpu.vector_store %arg5[%184, %c0_45, %c0_46], %187 {strides = array<i32>} : memref<8x8x128xf32, #tpu.memory_space<vmem>>, vector<1x8x128xf32>,
    %c5_i32 = arith.constant 5 : i32
    %188 = arith.index_cast %c5_i32 : i32 to index
    %c0_47 = arith.constant 0 : index
    %c0_48 = arith.constant 0 : index
    %189 = vector.load %arg5[%188, %c0_47, %c0_48] : memref<8x8x128xf32, #tpu.memory_space<vmem>>, vector<1x8x128xf32>
    %190 = vector.shape_cast %189 : vector<1x8x128xf32> to vector<8x128xf32>
    %191 = tpu.concatenate %190, %183 in 1 : vector<8x128xf32>, vector<8x128xf32> -> vector<8x256xf32>
    %cst_49 = arith.constant dense<0.000000e+00> : vector<8x512xf32>
    %192 = tpu.matmul %191, %4, %cst_49 {dimension_numbers = #tpu.dot_dimension_numbers<[1], [0], [0], [1], [0, 0, 1, 1], [], []>} : vector<8x256xf32>, vector<256x512xf32>, vector<8x512xf32> -> vector<8x512xf32>
    %193 = vector.broadcast %6 : vector<1x512xf32> to vector<8x512xf32>
    %194 = arith.addf %192, %193 : vector<8x512xf32>
    %195 = vector.extract_strided_slice %194 {offsets = [0, 0], sizes = [8, 128], strides = [1, 1]} : vector<8x512xf32> to vector<8x128xf32>
    %196 = arith.negf %195 : vector<8x128xf32>
    %197 = math.exp %196 : vector<8x128xf32>
    %cst_50 = arith.constant 1.000000e+00 : f32
    %198 = vector.broadcast %cst_50 : f32 to vector<8x128xf32>
    %199 = arith.addf %198, %197 : vector<8x128xf32>
    %200 = arith.divf %198, %199 : vector<8x128xf32>
    %201 = vector.extract_strided_slice %194 {offsets = [0, 128], sizes = [8, 128], strides = [1, 1]} : vector<8x512xf32> to vector<8x128xf32>
    %202 = arith.negf %201 : vector<8x128xf32>
    %203 = math.exp %202 : vector<8x128xf32>
    %cst_51 = arith.constant 1.000000e+00 : f32
    %204 = vector.broadcast %cst_51 : f32 to vector<8x128xf32>
    %205 = arith.addf %204, %203 : vector<8x128xf32>
    %206 = arith.divf %204, %205 : vector<8x128xf32>
    %207 = vector.extract_strided_slice %194 {offsets = [0, 256], sizes = [8, 128], strides = [1, 1]} : vector<8x512xf32> to vector<8x128xf32>
    %208 = math.tanh %207 : vector<8x128xf32>
    %209 = vector.extract_strided_slice %194 {offsets = [0, 384], sizes = [8, 128], strides = [1, 1]} : vector<8x512xf32> to vector<8x128xf32>
    %210 = arith.negf %209 : vector<8x128xf32>
    %211 = math.exp %210 : vector<8x128xf32>
    %cst_52 = arith.constant 1.000000e+00 : f32
    %212 = vector.broadcast %cst_52 : f32 to vector<8x128xf32>
    %213 = arith.addf %212, %211 : vector<8x128xf32>
    %214 = arith.divf %212, %213 : vector<8x128xf32>
    %215 = arith.mulf %206, %181 : vector<8x128xf32>
    %216 = arith.mulf %200, %208 : vector<8x128xf32>
    %217 = arith.addf %215, %216 : vector<8x128xf32>
    %218 = math.tanh %217 : vector<8x128xf32>
    %219 = arith.mulf %214, %218 : vector<8x128xf32>
    %220 = arith.index_cast %c5_i32 : i32 to index
    %c0_53 = arith.constant 0 : index
    %c0_54 = arith.constant 0 : index
    %221 = vector.load %arg5[%220, %c0_53, %c0_54] : memref<8x8x128xf32, #tpu.memory_space<vmem>>, vector<1x8x128xf32>
    %222 = vector.shape_cast %221 : vector<1x8x128xf32> to vector<8x128xf32>
    %223 = vector.shape_cast %219 : vector<8x128xf32> to vector<1x8x128xf32>
    tpu.vector_store %arg5[%220, %c0_53, %c0_54], %223 {strides = array<i32>} : memref<8x8x128xf32, #tpu.memory_space<vmem>>, vector<1x8x128xf32>,
    %c6_i32 = arith.constant 6 : i32
    %224 = arith.index_cast %c6_i32 : i32 to index
    %c0_55 = arith.constant 0 : index
    %c0_56 = arith.constant 0 : index
    %225 = vector.load %arg5[%224, %c0_55, %c0_56] : memref<8x8x128xf32, #tpu.memory_space<vmem>>, vector<1x8x128xf32>
    %226 = vector.shape_cast %225 : vector<1x8x128xf32> to vector<8x128xf32>
    %227 = tpu.concatenate %226, %219 in 1 : vector<8x128xf32>, vector<8x128xf32> -> vector<8x256xf32>
    %cst_57 = arith.constant dense<0.000000e+00> : vector<8x512xf32>
    %228 = tpu.matmul %227, %4, %cst_57 {dimension_numbers = #tpu.dot_dimension_numbers<[1], [0], [0], [1], [0, 0, 1, 1], [], []>} : vector<8x256xf32>, vector<256x512xf32>, vector<8x512xf32> -> vector<8x512xf32>
    %229 = vector.broadcast %6 : vector<1x512xf32> to vector<8x512xf32>
    %230 = arith.addf %228, %229 : vector<8x512xf32>
    %231 = vector.extract_strided_slice %230 {offsets = [0, 0], sizes = [8, 128], strides = [1, 1]} : vector<8x512xf32> to vector<8x128xf32>
    %232 = arith.negf %231 : vector<8x128xf32>
    %233 = math.exp %232 : vector<8x128xf32>
    %cst_58 = arith.constant 1.000000e+00 : f32
    %234 = vector.broadcast %cst_58 : f32 to vector<8x128xf32>
    %235 = arith.addf %234, %233 : vector<8x128xf32>
    %236 = arith.divf %234, %235 : vector<8x128xf32>
    %237 = vector.extract_strided_slice %230 {offsets = [0, 128], sizes = [8, 128], strides = [1, 1]} : vector<8x512xf32> to vector<8x128xf32>
    %238 = arith.negf %237 : vector<8x128xf32>
    %239 = math.exp %238 : vector<8x128xf32>
    %cst_59 = arith.constant 1.000000e+00 : f32
    %240 = vector.broadcast %cst_59 : f32 to vector<8x128xf32>
    %241 = arith.addf %240, %239 : vector<8x128xf32>
    %242 = arith.divf %240, %241 : vector<8x128xf32>
    %243 = vector.extract_strided_slice %230 {offsets = [0, 256], sizes = [8, 128], strides = [1, 1]} : vector<8x512xf32> to vector<8x128xf32>
    %244 = math.tanh %243 : vector<8x128xf32>
    %245 = vector.extract_strided_slice %230 {offsets = [0, 384], sizes = [8, 128], strides = [1, 1]} : vector<8x512xf32> to vector<8x128xf32>
    %246 = arith.negf %245 : vector<8x128xf32>
    %247 = math.exp %246 : vector<8x128xf32>
    %cst_60 = arith.constant 1.000000e+00 : f32
    %248 = vector.broadcast %cst_60 : f32 to vector<8x128xf32>
    %249 = arith.addf %248, %247 : vector<8x128xf32>
    %250 = arith.divf %248, %249 : vector<8x128xf32>
    %251 = arith.mulf %242, %217 : vector<8x128xf32>
    %252 = arith.mulf %236, %244 : vector<8x128xf32>
    %253 = arith.addf %251, %252 : vector<8x128xf32>
    %254 = math.tanh %253 : vector<8x128xf32>
    %255 = arith.mulf %250, %254 : vector<8x128xf32>
    %256 = arith.index_cast %c6_i32 : i32 to index
    %c0_61 = arith.constant 0 : index
    %c0_62 = arith.constant 0 : index
    %257 = vector.load %arg5[%256, %c0_61, %c0_62] : memref<8x8x128xf32, #tpu.memory_space<vmem>>, vector<1x8x128xf32>
    %258 = vector.shape_cast %257 : vector<1x8x128xf32> to vector<8x128xf32>
    %259 = vector.shape_cast %255 : vector<8x128xf32> to vector<1x8x128xf32>
    tpu.vector_store %arg5[%256, %c0_61, %c0_62], %259 {strides = array<i32>} : memref<8x8x128xf32, #tpu.memory_space<vmem>>, vector<1x8x128xf32>,
    %c7_i32 = arith.constant 7 : i32
    %260 = arith.index_cast %c7_i32 : i32 to index
    %c0_63 = arith.constant 0 : index
    %c0_64 = arith.constant 0 : index
    %261 = vector.load %arg5[%260, %c0_63, %c0_64] : memref<8x8x128xf32, #tpu.memory_space<vmem>>, vector<1x8x128xf32>
    %262 = vector.shape_cast %261 : vector<1x8x128xf32> to vector<8x128xf32>
    %263 = tpu.concatenate %262, %255 in 1 : vector<8x128xf32>, vector<8x128xf32> -> vector<8x256xf32>
    %cst_65 = arith.constant dense<0.000000e+00> : vector<8x512xf32>
    %264 = tpu.matmul %263, %4, %cst_65 {dimension_numbers = #tpu.dot_dimension_numbers<[1], [0], [0], [1], [0, 0, 1, 1], [], []>} : vector<8x256xf32>, vector<256x512xf32>, vector<8x512xf32> -> vector<8x512xf32>
    %265 = vector.broadcast %6 : vector<1x512xf32> to vector<8x512xf32>
    %266 = arith.addf %264, %265 : vector<8x512xf32>
    %267 = vector.extract_strided_slice %266 {offsets = [0, 0], sizes = [8, 128], strides = [1, 1]} : vector<8x512xf32> to vector<8x128xf32>
    %268 = arith.negf %267 : vector<8x128xf32>
    %269 = math.exp %268 : vector<8x128xf32>
    %cst_66 = arith.constant 1.000000e+00 : f32
    %270 = vector.broadcast %cst_66 : f32 to vector<8x128xf32>
    %271 = arith.addf %270, %269 : vector<8x128xf32>
    %272 = arith.divf %270, %271 : vector<8x128xf32>
    %273 = vector.extract_strided_slice %266 {offsets = [0, 128], sizes = [8, 128], strides = [1, 1]} : vector<8x512xf32> to vector<8x128xf32>
    %274 = arith.negf %273 : vector<8x128xf32>
    %275 = math.exp %274 : vector<8x128xf32>
    %cst_67 = arith.constant 1.000000e+00 : f32
    %276 = vector.broadcast %cst_67 : f32 to vector<8x128xf32>
    %277 = arith.addf %276, %275 : vector<8x128xf32>
    %278 = arith.divf %276, %277 : vector<8x128xf32>
    %279 = vector.extract_strided_slice %266 {offsets = [0, 256], sizes = [8, 128], strides = [1, 1]} : vector<8x512xf32> to vector<8x128xf32>
    %280 = math.tanh %279 : vector<8x128xf32>
    %281 = vector.extract_strided_slice %266 {offsets = [0, 384], sizes = [8, 128], strides = [1, 1]} : vector<8x512xf32> to vector<8x128xf32>
    %282 = arith.negf %281 : vector<8x128xf32>
    %283 = math.exp %282 : vector<8x128xf32>
    %cst_68 = arith.constant 1.000000e+00 : f32
    %284 = vector.broadcast %cst_68 : f32 to vector<8x128xf32>
    %285 = arith.addf %284, %283 : vector<8x128xf32>
    %286 = arith.divf %284, %285 : vector<8x128xf32>
    %287 = arith.mulf %278, %253 : vector<8x128xf32>
    %288 = arith.mulf %272, %280 : vector<8x128xf32>
    %289 = arith.addf %287, %288 : vector<8x128xf32>
    %290 = math.tanh %289 : vector<8x128xf32>
    %291 = arith.mulf %286, %290 : vector<8x128xf32>
    %292 = arith.index_cast %c7_i32 : i32 to index
    %c0_69 = arith.constant 0 : index
    %c0_70 = arith.constant 0 : index
    %293 = vector.load %arg5[%292, %c0_69, %c0_70] : memref<8x8x128xf32, #tpu.memory_space<vmem>>, vector<1x8x128xf32>
    %294 = vector.shape_cast %293 : vector<1x8x128xf32> to vector<8x128xf32>
    %295 = vector.shape_cast %291 : vector<8x128xf32> to vector<1x8x128xf32>
    tpu.vector_store %arg5[%292, %c0_69, %c0_70], %295 {strides = array<i32>} : memref<8x8x128xf32, #tpu.memory_space<vmem>>, vector<1x8x128xf32>,
    %c8_i32 = arith.constant 8 : i32
    %c1_i32_71 = arith.constant 1 : i32
    %296 = arith.cmpi eq, %arg0, %c1_i32_71 : i32
    %297 = arith.extui %296 : i1 to i32
    %c0_i32_72 = arith.constant 0 : i32
    %298 = arith.cmpi ne, %297, %c0_i32_72 : i32
    scf.if %298 {
      %c0_73 = arith.constant 0 : index
      %c0_74 = arith.constant 0 : index
      %c0_75 = arith.constant 0 : index
      %299 = vector.load %arg5[%c0_73, %c0_74, %c0_75] : memref<8x8x128xf32, #tpu.memory_space<vmem>>, vector<8x8x128xf32>
      %c0_76 = arith.constant 0 : index
      %c0_77 = arith.constant 0 : index
      %c0_78 = arith.constant 0 : index
      %300 = vector.load %arg4[%c0_76, %c0_77, %c0_78] : memref<8x8x128xf32, #tpu.memory_space<vmem>>, vector<8x8x128xf32>
      tpu.vector_store %arg4[%c0_76, %c0_77, %c0_78], %299 {strides = array<i32>} : memref<8x8x128xf32, #tpu.memory_space<vmem>>, vector<8x8x128xf32>,
    } else {
    }
    return
  }
  func.func @transform_0(%arg0: i32) -> (i32, i32, i32) {
    %c0_i32 = arith.constant 0 : i32
    %c0_i32_0 = arith.constant 0 : i32
    %c0_i32_1 = arith.constant 0 : i32
    %c0_i32_2 = arith.constant 0 : i32
    return %c0_i32, %c0_i32_0, %c0_i32_1 : i32, i32, i32
  }
  func.func @transform_1(%arg0: i32) -> (i32, i32, i32) {
    %c0_i32 = arith.constant 0 : i32
    %c0_i32_0 = arith.constant 0 : i32
    %c0_i32_1 = arith.constant 0 : i32
    return %arg0, %c0_i32, %c0_i32_0 : i32, i32, i32
  }
  func.func @transform_2(%arg0: i32) -> (i32, i32, i32) {
    %c0_i32 = arith.constant 0 : i32
    %c0_i32_0 = arith.constant 0 : i32
    %c0_i32_1 = arith.constant 0 : i32
    return %arg0, %c0_i32, %c0_i32_0 : i32, i32, i32
  }
  func.func @transform_3(%arg0: i32) -> (i32, i32, i32) {
    %c0_i32 = arith.constant 0 : i32
    %c0_i32_0 = arith.constant 0 : i32
    %c0_i32_1 = arith.constant 0 : i32
    %c0_i32_2 = arith.constant 0 : i32
    return %c0_i32, %c0_i32_0, %c0_i32_1 : i32, i32, i32
  }
}

</mosaic_0001>

<llo_original>
// kernel: tpu_custom_call.1
$region0: #{tpu_custom_call.1}
  #allocation0 [shape = 'u32[]', space=smem, size = 0x4, offset = 0x4, fixed_abs, tag = 'smem constant byte address 0x4 - core index']
  #allocation1 [shape = 'u32[144,128]{1,0:T(1,128)}', space=vmem, size = 0x12000, scoped, tag = 'internal scratch']
  #allocation2 [shape = 'f32[8,8,128]{2,1,0:T(8,128)}', space=vmem, size = 0x8000, scoped, tag = 'scratch operand']
  %s0 = inlined_call_operand.hbm [shape: f32[8,8,128], index: 0, kind: input, shape index: {}]
  %s1 = inlined_call_operand.hbm [shape: f32[2,256,512], index: 1, kind: input, shape index: {}]
  %s2 = inlined_call_operand.hbm [shape: f32[2,1,512], index: 2, kind: input, shape index: {}]
  %s3 = inlined_call_operand.hbm [shape: f32[8,8,128], index: 3, kind: output, shape index: {}]
  %s4 = sld [smem:[#allocation0]]
  $region65: #{tpu_custom_call.1} parent=0
    _
  %s6 = ssub.s32 1, %s4
  %s7 = scalar_select 0, %s6, %s4
  $region1: #{tpu_custom_call.1} parent=0
    #allocation3 [shape = 'u8[32768]{0}', space=vmem, size = 0x8000, scoped, tag = 'input window, operand 0, single buffered']
    #allocation4 [shape = 's32[2]{0}', space=sflag, size = 0x8, scoped, tag = 'scoped memory for tpu_custom_call.1']
    #allocation5 [shape = 's32[2]{0}', space=sflag, size = 0x8, scoped, tag = 'scoped memory for tpu_custom_call.1']
    #allocation6 [shape = 'u8[1048576]{0}', space=vmem, size = 0x100000, scoped, tag = 'input window, operand 1']
    #allocation7 [shape = 's32[2]{0}', space=sflag, size = 0x8, scoped, tag = 'scoped memory for tpu_custom_call.1']
    #allocation8 [shape = 'u8[4096]{0}', space=vmem, size = 0x1000, scoped, tag = 'input window, operand 2']
    #allocation9 [shape = 'u8[32768]{0}', space=vmem, size = 0x8000, scoped, tag = 'output window, operand 0, single buffered']
    %8 = vsyncpa [#allocation4], 0
    %9 = vsyncpa [#allocation7], 0
    %s10 = scalar_lea.sflag [#allocation7], 1
    %11 = vsyncpa %s10, 0
    %12 = vsyncpa [#allocation5], 0
    loop: start=0, step=1, limit=4
    $region2: #{tpu_custom_call.1} parent=1 // loop_pre_header
      _
    $region3: #{tpu_custom_call.1} parent=1 // loop_header
      %s14 = sphi 0, %s18
      %p15 = scmp.ge.s32.totalorder %s14, 4
      %s22 = sphi 0, %s22
      %s24 = sphi 0, %s22
      %s25 = sphi 0, %s24
      %s39 = sphi 0, %s25
      %s45 = sphi 0, %s47
      %s48 = sphi 0, %s45
      %s49 = sphi 0, %s48
      %s65 = sphi 0, %s49
      %s71 = sphi 0, %s73
      %s74 = sphi 0, %s71
      %s75 = sphi 0, %s74
      %s91 = sphi 0, %s75
      %s95 = sphi 0, %s95
      %s97 = sphi 0, %s95
      %s98 = sphi 0, %s97
      %s112 = sphi 0, %s98
    $region4: #{tpu_custom_call.1} parent=1 // loop_header_branch
      %17 = sbr.rel (%p15) target = $region8
    $region5: #{tpu_custom_call.1} parent=1 // loop_body
      %s19 = ssub.s32 %s14, 1
      %s20 = ssub.s32 %s14, 2
      %s21 = sadd.s32 %s14, 1
      %s23 = sadd.s32 %s22, 1
      %p26 = scmp.eq.s32.totalorder %s14, 1
      %p27 = scmp.ne.s32.totalorder %s22, %s24
      %p28 = scmp.eq.s32.totalorder %s14, 0
      %p29 = por %p27, %p28
      %p30 = scmp.ne.s32.totalorder %s22, %s24
      %p31 = scmp.eq.s32.totalorder %s19, 1
      %p32 = por %p30, %p31
      %p33 = scmp.ne.s32.totalorder %s24, %s25
      %p34 = scmp.eq.s32.totalorder %s19, 0
      %p35 = por %p33, %p34
      %p36 = scmp.ne.s32.totalorder %s24, %s25
      %p37 = scmp.eq.s32.totalorder %s20, 1
      %p38 = por %p36, %p37
      %p40 = scmp.ne.s32.totalorder %s25, %s39
      %p41 = scmp.eq.s32.totalorder %s20, 0
      %p42 = por %p40, %p41
      %s43 = ssub.s32 %s14, %s21
      %p44 = scmp.eq.s32.totalorder %s43, 0
      %s46 = sadd.s32 %s45, 1
      %s47 = scalar_select %p44, %s45, %s46
      %p50 = pneg %p44
      %p51 = scmp.eq.s32.totalorder %s14, 1
      %p52 = por %p50, %p51
      %p53 = scmp.ne.s32.totalorder %s45, %s48
      %p54 = scmp.eq.s32.totalorder %s14, 0
      %p55 = por %p53, %p54
      %p56 = scmp.ne.s32.totalorder %s45, %s48
      %p57 = scmp.eq.s32.totalorder %s19, 1
      %p58 = por %p56, %p57
      %p59 = scmp.ne.s32.totalorder %s48, %s49
      %p60 = scmp.eq.s32.totalorder %s19, 0
      %p61 = por %p59, %p60
      %p62 = scmp.ne.s32.totalorder %s48, %s49
      %p63 = scmp.eq.s32.totalorder %s20, 1
      %p64 = por %p62, %p63
      %p66 = scmp.ne.s32.totalorder %s49, %s65
      %p67 = scmp.eq.s32.totalorder %s20, 0
      %p68 = por %p66, %p67
      %s69 = ssub.s32 %s14, %s21
      %p70 = scmp.eq.s32.totalorder %s69, 0
      %s72 = sadd.s32 %s71, 1
      %s73 = scalar_select %p70, %s71, %s72
      %p76 = pneg %p70
      %p77 = scmp.eq.s32.totalorder %s14, 1
      %p78 = por %p76, %p77
      %p79 = scmp.ne.s32.totalorder %s71, %s74
      %p80 = scmp.eq.s32.totalorder %s14, 0
      %p81 = por %p79, %p80
      %p82 = scmp.ne.s32.totalorder %s71, %s74
      %p83 = scmp.eq.s32.totalorder %s19, 1
      %p84 = por %p82, %p83
      %p85 = scmp.ne.s32.totalorder %s74, %s75
      %p86 = scmp.eq.s32.totalorder %s19, 0
      %p87 = por %p85, %p86
      %p88 = scmp.ne.s32.totalorder %s74, %s75
      %p89 = scmp.eq.s32.totalorder %s20, 1
      %p90 = por %p88, %p89
      %p92 = scmp.ne.s32.totalorder %s75, %s91
      %p93 = scmp.eq.s32.totalorder %s20, 0
      %p94 = por %p92, %p93
      %s96 = sadd.s32 %s95, 1
      %p99 = scmp.eq.s32.totalorder %s14, 1
      %p100 = scmp.ne.s32.totalorder %s95, %s97
      %p101 = scmp.eq.s32.totalorder %s14, 0
      %p102 = por %p100, %p101
      %p103 = scmp.ne.s32.totalorder %s95, %s97
      %p104 = scmp.eq.s32.totalorder %s19, 1
      %p105 = por %p103, %p104
      %p106 = scmp.ne.s32.totalorder %s97, %s98
      %p107 = scmp.eq.s32.totalorder %s19, 0
      %p108 = por %p106, %p107
      %p109 = scmp.ne.s32.totalorder %s97, %s98
      %p110 = scmp.eq.s32.totalorder %s20, 1
      %p111 = por %p109, %p110
      %p113 = scmp.ne.s32.totalorder %s98, %s112
      %p114 = scmp.eq.s32.totalorder %s20, 0
      %p115 = por %p113, %p114
      %p116 = scmp.le.s32.totalorder 1, %s14
      %p117 = scmp.lt.s32.totalorder %s14, 3
      %p118 = pnand %p116, %p117
      %p119 = pneg %p118
      // Predicated region
      $region9: #{tpu_custom_call.1} parent=5 // pred_check
        _
      $region10: #{tpu_custom_call.1} parent=5 // pred_check_branch
        %121 = sbr.rel (%p118) target = $region12
      $region11: #{tpu_custom_call.1} parent=5 // pred_region
        %s122 = ssub.s32 %s14, 1
        // Predicated region
        $region13: #{tpu_custom_call.1} parent=11 // pred_check
          %p123 = pneg %p35
        $region14: #{tpu_custom_call.1} parent=11 // pred_check_branch
          %125 = sbr.rel (%p123) target = $region16
        $region15: #{tpu_custom_call.1} parent=11 // pred_region
          %s127 = ssub.s32 1024, 1024
          %128 = vsyncadd [#allocation4], %s127
          %s129 = sshll.u32 [#allocation3], 4
          %s130 = int_to_ptr.vmem [resolvable:$true] %s129
          %135 = dma.hbm_to_vmem [thread:$0]  %s0, 1024, %s130, [#allocation4], 128, 128, 8
        $region16: #{tpu_custom_call.1} parent=11 // pred_fallthru
          _
      $region12: #{tpu_custom_call.1} parent=5 // pred_fallthru
        _
      %p136 = scmp.lt.s32.totalorder %s14, 2
      // Predicated region
      $region17: #{tpu_custom_call.1} parent=5 // pred_check
        %p137 = pneg %p136
      $region18: #{tpu_custom_call.1} parent=5 // pred_check_branch
        %139 = sbr.rel (%p137) target = $region20
      $region19: #{tpu_custom_call.1} parent=5 // pred_region
        // Predicated region
        $region21: #{tpu_custom_call.1} parent=19 // pred_check
          %p140 = pneg %p55
        $region22: #{tpu_custom_call.1} parent=19 // pred_check_branch
          %142 = sbr.rel (%p140) target = $region24
        $region23: #{tpu_custom_call.1} parent=19 // pred_region
          %s143 = sand.u32 %s14, 1
          %s144 = scalar_lea.sflag [#allocation7], %s143
          %s145 = sand.u32 %s45, 1
          %s146 = smul.addr %s145, 1024
          %s147 = scalar_lea.vmem [#allocation6], %s146
          %s149 = ssub.s32 16384, 16384
          %150 = vsyncadd %s144, %s149
          %s151 = smul.addr %s14, 128
          %s152 = smul.addr %s151, 128
          %s153 = scalar_lea.hbm %s1, %s152
          %s154 = sshll.u32 %s147, 4
          %s155 = int_to_ptr.vmem [resolvable:$true] %s154
          %160 = dma.hbm_to_vmem [thread:$0]  %s153, 16384, %s155, %s144, 512, 512, 32
        $region24: #{tpu_custom_call.1} parent=19 // pred_fallthru
          _
        // Predicated region
        $region25: #{tpu_custom_call.1} parent=19 // pred_check
          %p161 = pneg %p81
        $region26: #{tpu_custom_call.1} parent=19 // pred_check_branch
          %163 = sbr.rel (%p161) target = $region28
        $region27: #{tpu_custom_call.1} parent=19 // pred_region
          %s164 = sand.u32 %s14, 1
          %s165 = scalar_lea.sflag [#allocation7], %s164
          %s166 = sand.u32 %s71, 1
          %s167 = smul.addr %s166, 4
          %s168 = scalar_lea.vmem [#allocation8], %s167
          %s170 = ssub.s32 64, 64
          %171 = vsyncadd %s165, %s170
          %s172 = smul.addr %s14, 4
          %s173 = smul.addr %s172, 16
          %s174 = scalar_lea.hbm %s2, %s173
          %s176 = sshll.u32 %s168, 4
          %s177 = int_to_ptr.vmem [resolvable:$true] %s176
          %179 = dma.hbm_to_vmem [thread:$0]  %s174, 64, %s177, %s165
        $region28: #{tpu_custom_call.1} parent=19 // pred_fallthru
          _
      $region20: #{tpu_custom_call.1} parent=5 // pred_fallthru
        _
      %p180 = scmp.le.s32.totalorder 1, %s14
      %p181 = scmp.lt.s32.totalorder %s14, 3
      %p182 = pnand %p180, %p181
      %p183 = pneg %p182
      // Predicated region
      $region29: #{tpu_custom_call.1} parent=5 // pred_check
        _
      $region30: #{tpu_custom_call.1} parent=5 // pred_check_branch
        %185 = sbr.rel (%p182) target = $region32
      $region31: #{tpu_custom_call.1} parent=5 // pred_region
        %s186 = ssub.s32 %s14, 1
        // Predicated region
        $region33: #{tpu_custom_call.1} parent=31 // pred_check
          %p187 = pneg %p35
        $region34: #{tpu_custom_call.1} parent=31 // pred_check_branch
          %189 = sbr.rel (%p187) target = $region36
        $region35: #{tpu_custom_call.1} parent=31 // pred_region
          %190 = dma.done [#allocation4], 1024
        $region36: #{tpu_custom_call.1} parent=31 // pred_fallthru
          _
        %s191 = sand.u32 %s19, 1
        %s192 = scalar_lea.sflag [#allocation7], %s191
        %s193 = sand.u32 %s48, 1
        %s194 = smul.addr %s193, 1024
        %s195 = scalar_lea.vmem [#allocation6], %s194
        // Predicated region
        $region37: #{tpu_custom_call.1} parent=31 // pred_check
          %p196 = pneg %p61
        $region38: #{tpu_custom_call.1} parent=31 // pred_check_branch
          %198 = sbr.rel (%p196) target = $region40
        $region39: #{tpu_custom_call.1} parent=31 // pred_region
          %199 = dma.done %s192, 16384
        $region40: #{tpu_custom_call.1} parent=31 // pred_fallthru
          _
        %s200 = sand.u32 %s19, 1
        %s201 = scalar_lea.sflag [#allocation7], %s200
        %s202 = sand.u32 %s74, 1
        %s203 = smul.addr %s202, 4
        %s204 = scalar_lea.vmem [#allocation8], %s203
        // Predicated region
        $region41: #{tpu_custom_call.1} parent=31 // pred_check
          %p205 = pneg %p87
        $region42: #{tpu_custom_call.1} parent=31 // pred_check_branch
          %207 = sbr.rel (%p205) target = $region44
        $region43: #{tpu_custom_call.1} parent=31 // pred_region
          %208 = dma.done %s201, 64
        $region44: #{tpu_custom_call.1} parent=31 // pred_fallthru
          _
        %p209 = pneg %p35
        %p210 = pneg %p32
        %s211 = sand.u32 %s19, 1
        %s212 = scalar_lea.sflag [#allocation7], %s211
        %s213 = sand.u32 %s48, 1
        %s214 = smul.addr %s213, 1024
        %s215 = scalar_lea.vmem [#allocation6], %s214
        %p216 = pneg %p61
        %p217 = pneg %p58
        %s218 = sand.u32 %s19, 1
        %s219 = scalar_lea.sflag [#allocation7], %s218
        %s220 = sand.u32 %s74, 1
        %s221 = smul.addr %s220, 4
        %s222 = scalar_lea.vmem [#allocation8], %s221
        %p223 = pneg %p87
        %p224 = pneg %p84
        %p225 = pneg %p108
        %p226 = pneg %p105
        %p227 = scmp.eq.s32.totalorder %s19, 0
        // Predicated region
        $region45: #{tpu_custom_call.1} parent=31 // pred_check
          %p228 = pneg %p227
        $region46: #{tpu_custom_call.1} parent=31 // pred_check_branch
          %230 = sbr.rel (%p228) target = $region48
        $region47: #{tpu_custom_call.1} parent=31 // pred_region
          %v231 = vld [vmem:[#allocation3] sm:$0xff]
          %v232 = vld [vmem:[#allocation3 + $0x8] sm:$0xff]
          %v233 = vld [vmem:[#allocation3 + $0x10] sm:$0xff]
          %v234 = vld [vmem:[#allocation3 + $0x18] sm:$0xff]
          %v235 = vld [vmem:[#allocation3 + $0x20] sm:$0xff]
          %v236 = vld [vmem:[#allocation3 + $0x28] sm:$0xff]
          %v237 = vld [vmem:[#allocation3 + $0x30] sm:$0xff]
          %v238 = vld [vmem:[#allocation3 + $0x38] sm:$0xff]
          %239 = vst [vmem:[#allocation2] sm:$0xff] %v231
          %240 = vst [vmem:[#allocation2 + $0x8] sm:$0xff] %v232
          %241 = vst [vmem:[#allocation2 + $0x10] sm:$0xff] %v233
          %242 = vst [vmem:[#allocation2 + $0x18] sm:$0xff] %v234
          %243 = vst [vmem:[#allocation2 + $0x20] sm:$0xff] %v235
          %244 = vst [vmem:[#allocation2 + $0x28] sm:$0xff] %v236
          %245 = vst [vmem:[#allocation2 + $0x30] sm:$0xff] %v237
          %246 = vst [vmem:[#allocation2 + $0x38] sm:$0xff] %v238
        $region48: #{tpu_custom_call.1} parent=31 // pred_fallthru
          _
        %v247 = vld [vmem:[%s195] sm:$0xff]
        %v248 = vld [vmem:[%s195 + $0x8] sm:$0xff]
        %v249 = vld [vmem:[%s195 + $0x10] sm:$0xff]
        %v250 = vld [vmem:[%s195 + $0x18] sm:$0xff]
        %v251 = vld [vmem:[%s195 + $0x20] sm:$0xff]
        %v252 = vld [vmem:[%s195 + $0x28] sm:$0xff]
        %v253 = vld [vmem:[%s195 + $0x30] sm:$0xff]
        %v254 = vld [vmem:[%s195 + $0x38] sm:$0xff]
        %v255 = vld [vmem:[%s195 + $0x40] sm:$0xff]
        %v256 = vld [vmem:[%s195 + $0x48] sm:$0xff]
        %v257 = vld [vmem:[%s195 + $0x50] sm:$0xff]
        %v258 = vld [vmem:[%s195 + $0x58] sm:$0xff]
        %v259 = vld [vmem:[%s195 + $0x60] sm:$0xff]
        %v260 = vld [vmem:[%s195 + $0x68] sm:$0xff]
        %v261 = vld [vmem:[%s195 + $0x70] sm:$0xff]
        %v262 = vld [vmem:[%s195 + $0x78] sm:$0xff]
        %v263 = vld [vmem:[%s195 + $0x80] sm:$0xff]
        %v264 = vld [vmem:[%s195 + $0x88] sm:$0xff]
        %v265 = vld [vmem:[%s195 + $0x90] sm:$0xff]
        %v266 = vld [vmem:[%s195 + $0x98] sm:$0xff]
        %v267 = vld [vmem:[%s195 + $0xa0] sm:$0xff]
        %v268 = vld [vmem:[%s195 + $0xa8] sm:$0xff]
        %v269 = vld [vmem:[%s195 + $0xb0] sm:$0xff]
        %v270 = vld [vmem:[%s195 + $0xb8] sm:$0xff]
        %v271 = vld [vmem:[%s195 + $0xc0] sm:$0xff]
        %v272 = vld [vmem:[%s195 + $0xc8] sm:$0xff]
        %v273 = vld [vmem:[%s195 + $0xd0] sm:$0xff]
        %v274 = vld [vmem:[%s195 + $0xd8] sm:$0xff]
        %v275 = vld [vmem:[%s195 + $0xe0] sm:$0xff]
        %v276 = vld [vmem:[%s195 + $0xe8] sm:$0xff]
        %v277 = vld [vmem:[%s195 + $0xf0] sm:$0xff]
        %v278 = vld [vmem:[%s195 + $0xf8] sm:$0xff]
        %v279 = vld [vmem:[%s195 + $0x100] sm:$0xff]
        %v280 = vld [vmem:[%s195 + $0x108] sm:$0xff]
        %v281 = vld [vmem:[%s195 + $0x110] sm:$0xff]
        %v282 = vld [vmem:[%s195 + $0x118] sm:$0xff]
        %v283 = vld [vmem:[%s195 + $0x120] sm:$0xff]
        %v284 = vld [vmem:[%s195 + $0x128] sm:$0xff]
        %v285 = vld [vmem:[%s195 + $0x130] sm:$0xff]
        %v286 = vld [vmem:[%s195 + $0x138] sm:$0xff]
        %v287 = vld [vmem:[%s195 + $0x140] sm:$0xff]
        %v288 = vld [vmem:[%s195 + $0x148] sm:$0xff]
        %v289 = vld [vmem:[%s195 + $0x150] sm:$0xff]
        %v290 = vld [vmem:[%s195 + $0x158] sm:$0xff]
        %v291 = vld [vmem:[%s195 + $0x160] sm:$0xff]
        %v292 = vld [vmem:[%s195 + $0x168] sm:$0xff]
        %v293 = vld [vmem:[%s195 + $0x170] sm:$0xff]
        %v294 = vld [vmem:[%s195 + $0x178] sm:$0xff]
        %v295 = vld [vmem:[%s195 + $0x180] sm:$0xff]
        %v296 = vld [vmem:[%s195 + $0x188] sm:$0xff]
        %v297 = vld [vmem:[%s195 + $0x190] sm:$0xff]
        %v298 = vld [vmem:[%s195 + $0x198] sm:$0xff]
        %v299 = vld [vmem:[%s195 + $0x1a0] sm:$0xff]
        %v300 = vld [vmem:[%s195 + $0x1a8] sm:$0xff]
        %v301 = vld [vmem:[%s195 + $0x1b0] sm:$0xff]
        %v302 = vld [vmem:[%s195 + $0x1b8] sm:$0xff]
        %v303 = vld [vmem:[%s195 + $0x1c0] sm:$0xff]
        %v304 = vld [vmem:[%s195 + $0x1c8] sm:$0xff]
        %v305 = vld [vmem:[%s195 + $0x1d0] sm:$0xff]
        %v306 = vld [vmem:[%s195 + $0x1d8] sm:$0xff]
        %v307 = vld [vmem:[%s195 + $0x1e0] sm:$0xff]
        %v308 = vld [vmem:[%s195 + $0x1e8] sm:$0xff]
        %v309 = vld [vmem:[%s195 + $0x1f0] sm:$0xff]
        %v310 = vld [vmem:[%s195 + $0x1f8] sm:$0xff]
        %v311 = vld [vmem:[%s195 + $0x200] sm:$0xff]
        %v312 = vld [vmem:[%s195 + $0x208] sm:$0xff]
        %v313 = vld [vmem:[%s195 + $0x210] sm:$0xff]
        %v314 = vld [vmem:[%s195 + $0x218] sm:$0xff]
        %v315 = vld [vmem:[%s195 + $0x220] sm:$0xff]
        %v316 = vld [vmem:[%s195 + $0x228] sm:$0xff]
        %v317 = vld [vmem:[%s195 + $0x230] sm:$0xff]
        %v318 = vld [vmem:[%s195 + $0x238] sm:$0xff]
        %v319 = vld [vmem:[%s195 + $0x240] sm:$0xff]
        %v320 = vld [vmem:[%s195 + $0x248] sm:$0xff]
        %v321 = vld [vmem:[%s195 + $0x250] sm:$0xff]
        %v322 = vld [vmem:[%s195 + $0x258] sm:$0xff]
        %v323 = vld [vmem:[%s195 + $0x260] sm:$0xff]
        %v324 = vld [vmem:[%s195 + $0x268] sm:$0xff]
        %v325 = vld [vmem:[%s195 + $0x270] sm:$0xff]
        %v326 = vld [vmem:[%s195 + $0x278] sm:$0xff]
        %v327 = vld [vmem:[%s195 + $0x280] sm:$0xff]
        %v328 = vld [vmem:[%s195 + $0x288] sm:$0xff]
        %v329 = vld [vmem:[%s195 + $0x290] sm:$0xff]
        %v330 = vld [vmem:[%s195 + $0x298] sm:$0xff]
        %v331 = vld [vmem:[%s195 + $0x2a0] sm:$0xff]
        %v332 = vld [vmem:[%s195 + $0x2a8] sm:$0xff]
        %v333 = vld [vmem:[%s195 + $0x2b0] sm:$0xff]
        %v334 = vld [vmem:[%s195 + $0x2b8] sm:$0xff]
        %v335 = vld [vmem:[%s195 + $0x2c0] sm:$0xff]
        %v336 = vld [vmem:[%s195 + $0x2c8] sm:$0xff]
        %v337 = vld [vmem:[%s195 + $0x2d0] sm:$0xff]
        %v338 = vld [vmem:[%s195 + $0x2d8] sm:$0xff]
        %v339 = vld [vmem:[%s195 + $0x2e0] sm:$0xff]
        %v340 = vld [vmem:[%s195 + $0x2e8] sm:$0xff]
        %v341 = vld [vmem:[%s195 + $0x2f0] sm:$0xff]
        %v342 = vld [vmem:[%s195 + $0x2f8] sm:$0xff]
        %v343 = vld [vmem:[%s195 + $0x300] sm:$0xff]
        %v344 = vld [vmem:[%s195 + $0x308] sm:$0xff]
        %v345 = vld [vmem:[%s195 + $0x310] sm:$0xff]
        %v346 = vld [vmem:[%s195 + $0x318] sm:$0xff]
        %v347 = vld [vmem:[%s195 + $0x320] sm:$0xff]
        %v348 = vld [vmem:[%s195 + $0x328] sm:$0xff]
        %v349 = vld [vmem:[%s195 + $0x330] sm:$0xff]
        %v350 = vld [vmem:[%s195 + $0x338] sm:$0xff]
        %v351 = vld [vmem:[%s195 + $0x340] sm:$0xff]
        %v352 = vld [vmem:[%s195 + $0x348] sm:$0xff]
        %v353 = vld [vmem:[%s195 + $0x350] sm:$0xff]
        %v354 = vld [vmem:[%s195 + $0x358] sm:$0xff]
        %v355 = vld [vmem:[%s195 + $0x360] sm:$0xff]
        %v356 = vld [vmem:[%s195 + $0x368] sm:$0xff]
        %v357 = vld [vmem:[%s195 + $0x370] sm:$0xff]
        %v358 = vld [vmem:[%s195 + $0x378] sm:$0xff]
        %v359 = vld [vmem:[%s195 + $0x380] sm:$0xff]
        %v360 = vld [vmem:[%s195 + $0x388] sm:$0xff]
        %v361 = vld [vmem:[%s195 + $0x390] sm:$0xff]
        %v362 = vld [vmem:[%s195 + $0x398] sm:$0xff]
        %v363 = vld [vmem:[%s195 + $0x3a0] sm:$0xff]
        %v364 = vld [vmem:[%s195 + $0x3a8] sm:$0xff]
        %v365 = vld [vmem:[%s195 + $0x3b0] sm:$0xff]
        %v366 = vld [vmem:[%s195 + $0x3b8] sm:$0xff]
        %v367 = vld [vmem:[%s195 + $0x3c0] sm:$0xff]
        %v368 = vld [vmem:[%s195 + $0x3c8] sm:$0xff]
        %v369 = vld [vmem:[%s195 + $0x3d0] sm:$0xff]
        %v370 = vld [vmem:[%s195 + $0x3d8] sm:$0xff]
        %v371 = vld [vmem:[%s195 + $0x3e0] sm:$0xff]
        %v372 = vld [vmem:[%s195 + $0x3e8] sm:$0xff]
        %v373 = vld [vmem:[%s195 + $0x3f0] sm:$0xff]
        %v374 = vld [vmem:[%s195 + $0x3f8] sm:$0xff]
        %v375 = vld [vmem:[%s204] sm:$0xf]
        %v376 = vld [vmem:[#allocation2] sm:$0xff]
        %v378 = vlaneseq
        %v379 = vshrl.u32 %v378, 7
        %v380 = vsub.s32 0, %v379
        %v381 = vrot.slane %v375, %v380
        %v382 = vlaneseq
        %v383 = vshrl.u32 %v382, 7
        %v384 = vsub.s32 1, %v383
        %v385 = vrot.slane %v375, %v384
        %v386 = vlaneseq
        %v387 = vshrl.u32 %v386, 7
        %v388 = vsub.s32 2, %v387
        %v389 = vrot.slane %v375, %v388
        %v390 = vlaneseq
        %v391 = vshrl.u32 %v390, 7
        %v392 = vsub.s32 3, %v391
        %v393 = vrot.slane %v375, %v392
        %398 = vmatprep.subr.mxu0 %v308
        %399 = vmatpush1.msra.mxu0 %v307
        %400 = vmatprep.subr.mxu0 %v304
        %401 = vmatpush1.msra.mxu0 %v303
        %402 = vmatprep.subr.mxu0 %v300
        %403 = vmatpush1.msra.mxu0 %v299
        %404 = vmatprep.subr.mxu0 %v296
        %405 = vmatpush1.msra.mxu0 %v295
        %406 = vmatprep.subr.mxu0 %v292
        %407 = vmatpush1.msra.mxu0 %v291
        %408 = vmatprep.subr.mxu0 %v288
        %409 = vmatpush1.msra.mxu0 %v287
        %410 = vmatprep.subr.mxu0 %v284
        %411 = vmatpush1.msra.mxu0 %v283
        %412 = vmatprep.subr.mxu0 %v280
        %413 = vmatpush1.msra.mxu0 %v279
        %414 = vmatprep.subr.mxu0 %v276
        %415 = vmatpush1.msra.mxu0 %v275
        %416 = vmatprep.subr.mxu0 %v272
        %417 = vmatpush1.msra.mxu0 %v271
        %418 = vmatprep.subr.mxu0 %v268
        %419 = vmatpush1.msra.mxu0 %v267
        %420 = vmatprep.subr.mxu0 %v264
        %421 = vmatpush1.msra.mxu0 %v263
        %422 = vmatprep.subr.mxu0 %v260
        %423 = vmatpush1.msra.mxu0 %v259
        %424 = vmatprep.subr.mxu0 %v256
        %425 = vmatpush1.msra.mxu0 %v255
        %426 = vmatprep.subr.mxu0 %v252
        %427 = vmatpush1.msra.mxu0 %v251
        %428 = vmatprep.subr.mxu0 %v248
        %429 = vmatpush1.msra.mxu0 %v247
        %430 = vmatprep.subr.mxu0 %v372
        %431 = vmatpush2.msra.mxu0 %v371
        %432 = vmatprep.subr.mxu0 %v368
        %433 = vmatpush2.msra.mxu0 %v367
        %434 = vmatprep.subr.mxu0 %v364
        %435 = vmatpush2.msra.mxu0 %v363
        %436 = vmatprep.subr.mxu0 %v360
        %437 = vmatpush2.msra.mxu0 %v359
        %438 = vmatprep.subr.mxu0 %v356
        %439 = vmatpush2.msra.mxu0 %v355
        %440 = vmatprep.subr.mxu0 %v352
        %441 = vmatpush2.msra.mxu0 %v351
        %442 = vmatprep.subr.mxu0 %v348
        %443 = vmatpush2.msra.mxu0 %v347
        %444 = vmatprep.subr.mxu0 %v344
        %445 = vmatpush2.msra.mxu0 %v343
        %446 = vmatprep.subr.mxu0 %v340
        %447 = vmatpush2.msra.mxu0 %v339
        %448 = vmatprep.subr.mxu0 %v336
        %449 = vmatpush2.msra.mxu0 %v335
        %450 = vmatprep.subr.mxu0 %v332
        %451 = vmatpush2.msra.mxu0 %v331
        %452 = vmatprep.subr.mxu0 %v328
        %453 = vmatpush2.msra.mxu0 %v327
        %454 = vmatprep.subr.mxu0 %v324
        %455 = vmatpush2.msra.mxu0 %v323
        %456 = vmatprep.subr.mxu0 %v320
        %457 = vmatpush2.msra.mxu0 %v319
        %458 = vmatprep.subr.mxu0 %v316
        %459 = vmatpush2.msra.mxu0 %v315
        %460 = vmatprep.subr.mxu0 %v312
        %461 = vmatpush2.msra.mxu0 %v311
        %462 = vmatprep.mubr.f32.mxu0 0.0
        %463 = vmatmul.mubr.f32.gmra.mxu0 %v376
        %v464 = vpop.f32.mrf.mxu0
        %v465 = vadd.f32 %v381, %v464
        %v466 = vpop.f32.mrf.mxu0
        %v467 = vadd.f32 %v385, %v466
        %468 = vdwg.mxu0
        %469 = vmatprep.subr.mxu0 %v310
        %470 = vmatpush1.msra.mxu0 %v309
        %471 = vmatprep.subr.mxu0 %v306
        %472 = vmatpush1.msra.mxu0 %v305
        %473 = vmatprep.subr.mxu0 %v302
        %474 = vmatpush1.msra.mxu0 %v301
        %475 = vmatprep.subr.mxu0 %v298
        %476 = vmatpush1.msra.mxu0 %v297
        %477 = vmatprep.subr.mxu0 %v294
        %478 = vmatpush1.msra.mxu0 %v293
        %479 = vmatprep.subr.mxu0 %v290
        %480 = vmatpush1.msra.mxu0 %v289
        %481 = vmatprep.subr.mxu0 %v286
        %482 = vmatpush1.msra.mxu0 %v285
        %483 = vmatprep.subr.mxu0 %v282
        %484 = vmatpush1.msra.mxu0 %v281
        %485 = vmatprep.subr.mxu0 %v278
        %486 = vmatpush1.msra.mxu0 %v277
        %487 = vmatprep.subr.mxu0 %v274
        %488 = vmatpush1.msra.mxu0 %v273
        %489 = vmatprep.subr.mxu0 %v270
        %490 = vmatpush1.msra.mxu0 %v269
        %491 = vmatprep.subr.mxu0 %v266
        %492 = vmatpush1.msra.mxu0 %v265
        %493 = vmatprep.subr.mxu0 %v262
        %494 = vmatpush1.msra.mxu0 %v261
        %495 = vmatprep.subr.mxu0 %v258
        %496 = vmatpush1.msra.mxu0 %v257
        %497 = vmatprep.subr.mxu0 %v254
        %498 = vmatpush1.msra.mxu0 %v253
        %499 = vmatprep.subr.mxu0 %v250
        %500 = vmatpush1.msra.mxu0 %v249
        %501 = vmatprep.subr.mxu0 %v374
        %502 = vmatpush2.msra.mxu0 %v373
        %503 = vmatprep.subr.mxu0 %v370
        %504 = vmatpush2.msra.mxu0 %v369
        %505 = vmatprep.subr.mxu0 %v366
        %506 = vmatpush2.msra.mxu0 %v365
        %507 = vmatprep.subr.mxu0 %v362
        %508 = vmatpush2.msra.mxu0 %v361
        %509 = vmatprep.subr.mxu0 %v358
        %510 = vmatpush2.msra.mxu0 %v357
        %511 = vmatprep.subr.mxu0 %v354
        %512 = vmatpush2.msra.mxu0 %v353
        %513 = vmatprep.subr.mxu0 %v350
        %514 = vmatpush2.msra.mxu0 %v349
        %515 = vmatprep.subr.mxu0 %v346
        %516 = vmatpush2.msra.mxu0 %v345
        %517 = vmatprep.subr.mxu0 %v342
        %518 = vmatpush2.msra.mxu0 %v341
        %519 = vmatprep.subr.mxu0 %v338
        %520 = vmatpush2.msra.mxu0 %v337
        %521 = vmatprep.subr.mxu0 %v334
        %522 = vmatpush2.msra.mxu0 %v333
        %523 = vmatprep.subr.mxu0 %v330
        %524 = vmatpush2.msra.mxu0 %v329
        %525 = vmatprep.subr.mxu0 %v326
        %526 = vmatpush2.msra.mxu0 %v325
        %527 = vmatprep.subr.mxu0 %v322
        %528 = vmatpush2.msra.mxu0 %v321
        %529 = vmatprep.subr.mxu0 %v318
        %530 = vmatpush2.msra.mxu0 %v317
        %531 = vmatprep.subr.mxu0 %v314
        %532 = vmatpush2.msra.mxu0 %v313
        %533 = vmatprep.mubr.f32.mxu0 0.0
        %534 = vmatmul.mubr.f32.gmra.mxu0 %v376
        %v535 = vpop.f32.mrf.mxu0
        %v536 = vadd.f32 %v389, %v535
        %v537 = vpop.f32.mrf.mxu0
        %v538 = vadd.f32 %v393, %v537
        %539 = vdwg.mxu0
        %v540 = vxor.u32 %v465, 2147483648
        %v541 = vmul.f32 %v540, 1.442695
        %v542 = vpow.pop %v541
        %v543 = vadd.f32 %v542, 1.0
        %v544 = vrcp.pop %v543
        %v545 = vmul.f32 1.0, %v544
        %v546 = vxor.u32 %v467, 2147483648
        %v547 = vmul.f32 %v546, 1.442695
        %v548 = vpow.pop %v547
        %v549 = vadd.f32 %v548, 1.0
        %v550 = vrcp.pop %v549
        %v551 = vmul.f32 1.0, %v550
        %v552 = vtanh.pop %v536
        %v553 = vxor.u32 %v538, 2147483648
        %v554 = vmul.f32 %v553, 1.442695
        %v555 = vpow.pop %v554
        %v556 = vadd.f32 %v555, 1.0
        %v557 = vrcp.pop %v556
        %v558 = vmul.f32 1.0, %v557
        %v559 = vmul.f32 %v551, 0.0
        %v560 = vmul.f32 %v545, %v552
        %v561 = vadd.f32 %v559, %v560
        %v562 = vtanh.pop %v561
        %v563 = vmul.f32 %v558, %v562
        %564 = vst [vmem:[#allocation2] sm:$0xff] %v563
        %s565 = scalar_lea.vmem [#allocation2], 8
        %v566 = vld [vmem:[%s565] sm:$0xff]
        %567 = vmatprep.subr.mxu0 %v308
        %568 = vmatpush1.msra.mxu0 %v307
        %569 = vmatprep.subr.mxu0 %v304
        %570 = vmatpush1.msra.mxu0 %v303
        %571 = vmatprep.subr.mxu0 %v300
        %572 = vmatpush1.msra.mxu0 %v299
        %573 = vmatprep.subr.mxu0 %v296
        %574 = vmatpush1.msra.mxu0 %v295
        %575 = vmatprep.subr.mxu0 %v292
        %576 = vmatpush1.msra.mxu0 %v291
        %577 = vmatprep.subr.mxu0 %v288
        %578 = vmatpush1.msra.mxu0 %v287
        %579 = vmatprep.subr.mxu0 %v284
        %580 = vmatpush1.msra.mxu0 %v283
        %581 = vmatprep.subr.mxu0 %v280
        %582 = vmatpush1.msra.mxu0 %v279
        %583 = vmatprep.subr.mxu0 %v276
        %584 = vmatpush1.msra.mxu0 %v275
        %585 = vmatprep.subr.mxu0 %v272
        %586 = vmatpush1.msra.mxu0 %v271
        %587 = vmatprep.subr.mxu0 %v268
        %588 = vmatpush1.msra.mxu0 %v267
        %589 = vmatprep.subr.mxu0 %v264
        %590 = vmatpush1.msra.mxu0 %v263
        %591 = vmatprep.subr.mxu0 %v260
        %592 = vmatpush1.msra.mxu0 %v259
        %593 = vmatprep.subr.mxu0 %v256
        %594 = vmatpush1.msra.mxu0 %v255
        %595 = vmatprep.subr.mxu0 %v252
        %596 = vmatpush1.msra.mxu0 %v251
        %597 = vmatprep.subr.mxu0 %v248
        %598 = vmatpush1.msra.mxu0 %v247
        %599 = vmatprep.subr.mxu0 %v372
        %600 = vmatpush2.msra.mxu0 %v371
        %601 = vmatprep.subr.mxu0 %v368
        %602 = vmatpush2.msra.mxu0 %v367
        %603 = vmatprep.subr.mxu0 %v364
        %604 = vmatpush2.msra.mxu0 %v363
        %605 = vmatprep.subr.mxu0 %v360
        %606 = vmatpush2.msra.mxu0 %v359
        %607 = vmatprep.subr.mxu0 %v356
        %608 = vmatpush2.msra.mxu0 %v355
        %609 = vmatprep.subr.mxu0 %v352
        %610 = vmatpush2.msra.mxu0 %v351
        %611 = vmatprep.subr.mxu0 %v348
        %612 = vmatpush2.msra.mxu0 %v347
        %613 = vmatprep.subr.mxu0 %v344
        %614 = vmatpush2.msra.mxu0 %v343
        %615 = vmatprep.subr.mxu0 %v340
        %616 = vmatpush2.msra.mxu0 %v339
        %617 = vmatprep.subr.mxu0 %v336
        %618 = vmatpush2.msra.mxu0 %v335
        %619 = vmatprep.subr.mxu0 %v332
        %620 = vmatpush2.msra.mxu0 %v331
        %621 = vmatprep.subr.mxu0 %v328
        %622 = vmatpush2.msra.mxu0 %v327
        %623 = vmatprep.subr.mxu0 %v324
        %624 = vmatpush2.msra.mxu0 %v323
        %625 = vmatprep.subr.mxu0 %v320
        %626 = vmatpush2.msra.mxu0 %v319
        %627 = vmatprep.subr.mxu0 %v316
        %628 = vmatpush2.msra.mxu0 %v315
        %629 = vmatprep.subr.mxu0 %v312
        %630 = vmatpush2.msra.mxu0 %v311
        %631 = vmatprep.mubr.f32.mxu0 %v563
        %632 = vmatmul.mubr.f32.gmra.mxu0 %v566
        %v633 = vpop.f32.mrf.mxu0
        %v634 = vadd.f32 %v381, %v633
        %v635 = vpop.f32.mrf.mxu0
        %v636 = vadd.f32 %v385, %v635
        %637 = vdwg.mxu0
        %638 = vmatprep.subr.mxu0 %v310
        %639 = vmatpush1.msra.mxu0 %v309
        %640 = vmatprep.subr.mxu0 %v306
        %641 = vmatpush1.msra.mxu0 %v305
        %642 = vmatprep.subr.mxu0 %v302
        %643 = vmatpush1.msra.mxu0 %v301
        %644 = vmatprep.subr.mxu0 %v298
        %645 = vmatpush1.msra.mxu0 %v297
        %646 = vmatprep.subr.mxu0 %v294
        %647 = vmatpush1.msra.mxu0 %v293
        %648 = vmatprep.subr.mxu0 %v290
        %649 = vmatpush1.msra.mxu0 %v289
        %650 = vmatprep.subr.mxu0 %v286
        %651 = vmatpush1.msra.mxu0 %v285
        %652 = vmatprep.subr.mxu0 %v282
        %653 = vmatpush1.msra.mxu0 %v281
        %654 = vmatprep.subr.mxu0 %v278
        %655 = vmatpush1.msra.mxu0 %v277
        %656 = vmatprep.subr.mxu0 %v274
        %657 = vmatpush1.msra.mxu0 %v273
        %658 = vmatprep.subr.mxu0 %v270
        %659 = vmatpush1.msra.mxu0 %v269
        %660 = vmatprep.subr.mxu0 %v266
        %661 = vmatpush1.msra.mxu0 %v265
        %662 = vmatprep.subr.mxu0 %v262
        %663 = vmatpush1.msra.mxu0 %v261
        %664 = vmatprep.subr.mxu0 %v258
        %665 = vmatpush1.msra.mxu0 %v257
        %666 = vmatprep.subr.mxu0 %v254
        %667 = vmatpush1.msra.mxu0 %v253
        %668 = vmatprep.subr.mxu0 %v250
        %669 = vmatpush1.msra.mxu0 %v249
        %670 = vmatprep.subr.mxu0 %v374
        %671 = vmatpush2.msra.mxu0 %v373
        %672 = vmatprep.subr.mxu0 %v370
        %673 = vmatpush2.msra.mxu0 %v369
        %674 = vmatprep.subr.mxu0 %v366
        %675 = vmatpush2.msra.mxu0 %v365
        %676 = vmatprep.subr.mxu0 %v362
        %677 = vmatpush2.msra.mxu0 %v361
        %678 = vmatprep.subr.mxu0 %v358
        %679 = vmatpush2.msra.mxu0 %v357
        %680 = vmatprep.subr.mxu0 %v354
        %681 = vmatpush2.msra.mxu0 %v353
        %682 = vmatprep.subr.mxu0 %v350
        %683 = vmatpush2.msra.mxu0 %v349
        %684 = vmatprep.subr.mxu0 %v346
        %685 = vmatpush2.msra.mxu0 %v345
        %686 = vmatprep.subr.mxu0 %v342
        %687 = vmatpush2.msra.mxu0 %v341
        %688 = vmatprep.subr.mxu0 %v338
        %689 = vmatpush2.msra.mxu0 %v337
        %690 = vmatprep.subr.mxu0 %v334
        %691 = vmatpush2.msra.mxu0 %v333
        %692 = vmatprep.subr.mxu0 %v330
        %693 = vmatpush2.msra.mxu0 %v329
        %694 = vmatprep.subr.mxu0 %v326
        %695 = vmatpush2.msra.mxu0 %v325
        %696 = vmatprep.subr.mxu0 %v322
        %697 = vmatpush2.msra.mxu0 %v321
        %698 = vmatprep.subr.mxu0 %v318
        %699 = vmatpush2.msra.mxu0 %v317
        %700 = vmatprep.subr.mxu0 %v314
        %701 = vmatpush2.msra.mxu0 %v313
        %702 = vmatprep.mubr.f32.mxu0 %v563
        %703 = vmatmul.mubr.f32.gmra.mxu0 %v566
        %v704 = vpop.f32.mrf.mxu0
        %v705 = vadd.f32 %v389, %v704
        %v706 = vpop.f32.mrf.mxu0
        %v707 = vadd.f32 %v393, %v706
        %708 = vdwg.mxu0
        %v709 = vxor.u32 %v634, 2147483648
        %v710 = vmul.f32 %v709, 1.442695
        %v711 = vpow.pop %v710
        %v712 = vadd.f32 %v711, 1.0
        %v713 = vrcp.pop %v712
        %v714 = vmul.f32 1.0, %v713
        %v715 = vxor.u32 %v636, 2147483648
        %v716 = vmul.f32 %v715, 1.442695
        %v717 = vpow.pop %v716
        %v718 = vadd.f32 %v717, 1.0
        %v719 = vrcp.pop %v718
        %v720 = vmul.f32 1.0, %v719
        %v721 = vtanh.pop %v705
        %v722 = vxor.u32 %v707, 2147483648
        %v723 = vmul.f32 %v722, 1.442695
        %v724 = vpow.pop %v723
        %v725 = vadd.f32 %v724, 1.0
        %v726 = vrcp.pop %v725
        %v727 = vmul.f32 1.0, %v726
        %v728 = vmul.f32 %v720, %v561
        %v729 = vmul.f32 %v714, %v721
        %v730 = vadd.f32 %v728, %v729
        %v731 = vtanh.pop %v730
        %v732 = vmul.f32 %v727, %v731
        %733 = vst [vmem:[%s565] sm:$0xff] %v732
        %s734 = scalar_lea.vmem [#allocation2], 16
        %v735 = vld [vmem:[%s734] sm:$0xff]
        %736 = vmatprep.subr.mxu0 %v308
        %737 = vmatpush1.msra.mxu0 %v307
        %738 = vmatprep.subr.mxu0 %v304
        %739 = vmatpush1.msra.mxu0 %v303
        %740 = vmatprep.subr.mxu0 %v300
        %741 = vmatpush1.msra.mxu0 %v299
        %742 = vmatprep.subr.mxu0 %v296
        %743 = vmatpush1.msra.mxu0 %v295
        %744 = vmatprep.subr.mxu0 %v292
        %745 = vmatpush1.msra.mxu0 %v291
        %746 = vmatprep.subr.mxu0 %v288
        %747 = vmatpush1.msra.mxu0 %v287
        %748 = vmatprep.subr.mxu0 %v284
        %749 = vmatpush1.msra.mxu0 %v283
        %750 = vmatprep.subr.mxu0 %v280
        %751 = vmatpush1.msra.mxu0 %v279
        %752 = vmatprep.subr.mxu0 %v276
        %753 = vmatpush1.msra.mxu0 %v275
        %754 = vmatprep.subr.mxu0 %v272
        %755 = vmatpush1.msra.mxu0 %v271
        %756 = vmatprep.subr.mxu0 %v268
        %757 = vmatpush1.msra.mxu0 %v267
        %758 = vmatprep.subr.mxu0 %v264
        %759 = vmatpush1.msra.mxu0 %v263
        %760 = vmatprep.subr.mxu0 %v260
        %761 = vmatpush1.msra.mxu0 %v259
        %762 = vmatprep.subr.mxu0 %v256
        %763 = vmatpush1.msra.mxu0 %v255
        %764 = vmatprep.subr.mxu0 %v252
        %765 = vmatpush1.msra.mxu0 %v251
        %766 = vmatprep.subr.mxu0 %v248
        %767 = vmatpush1.msra.mxu0 %v247
        %768 = vmatprep.subr.mxu0 %v372
        %769 = vmatpush2.msra.mxu0 %v371
        %770 = vmatprep.subr.mxu0 %v368
        %771 = vmatpush2.msra.mxu0 %v367
        %772 = vmatprep.subr.mxu0 %v364
        %773 = vmatpush2.msra.mxu0 %v363
        %774 = vmatprep.subr.mxu0 %v360
        %775 = vmatpush2.msra.mxu0 %v359
        %776 = vmatprep.subr.mxu0 %v356
        %777 = vmatpush2.msra.mxu0 %v355
        %778 = vmatprep.subr.mxu0 %v352
        %779 = vmatpush2.msra.mxu0 %v351
        %780 = vmatprep.subr.mxu0 %v348
        %781 = vmatpush2.msra.mxu0 %v347
        %782 = vmatprep.subr.mxu0 %v344
        %783 = vmatpush2.msra.mxu0 %v343
        %784 = vmatprep.subr.mxu0 %v340
        %785 = vmatpush2.msra.mxu0 %v339
        %786 = vmatprep.subr.mxu0 %v336
        %787 = vmatpush2.msra.mxu0 %v335
        %788 = vmatprep.subr.mxu0 %v332
        %789 = vmatpush2.msra.mxu0 %v331
        %790 = vmatprep.subr.mxu0 %v328
        %791 = vmatpush2.msra.mxu0 %v327
        %792 = vmatprep.subr.mxu0 %v324
        %793 = vmatpush2.msra.mxu0 %v323
        %794 = vmatprep.subr.mxu0 %v320
        %795 = vmatpush2.msra.mxu0 %v319
        %796 = vmatprep.subr.mxu0 %v316
        %797 = vmatpush2.msra.mxu0 %v315
        %798 = vmatprep.subr.mxu0 %v312
        %799 = vmatpush2.msra.mxu0 %v311
        %800 = vmatprep.mubr.f32.mxu0 %v732
        %801 = vmatmul.mubr.f32.gmra.mxu0 %v735
        %v802 = vpop.f32.mrf.mxu0
        %v803 = vadd.f32 %v381, %v802
        %v804 = vpop.f32.mrf.mxu0
        %v805 = vadd.f32 %v385, %v804
        %806 = vdwg.mxu0
        %807 = vmatprep.subr.mxu0 %v310
        %808 = vmatpush1.msra.mxu0 %v309
        %809 = vmatprep.subr.mxu0 %v306
        %810 = vmatpush1.msra.mxu0 %v305
        %811 = vmatprep.subr.mxu0 %v302
        %812 = vmatpush1.msra.mxu0 %v301
        %813 = vmatprep.subr.mxu0 %v298
        %814 = vmatpush1.msra.mxu0 %v297
        %815 = vmatprep.subr.mxu0 %v294
        %816 = vmatpush1.msra.mxu0 %v293
        %817 = vmatprep.subr.mxu0 %v290
        %818 = vmatpush1.msra.mxu0 %v289
        %819 = vmatprep.subr.mxu0 %v286
        %820 = vmatpush1.msra.mxu0 %v285
        %821 = vmatprep.subr.mxu0 %v282
        %822 = vmatpush1.msra.mxu0 %v281
        %823 = vmatprep.subr.mxu0 %v278
        %824 = vmatpush1.msra.mxu0 %v277
        %825 = vmatprep.subr.mxu0 %v274
        %826 = vmatpush1.msra.mxu0 %v273
        %827 = vmatprep.subr.mxu0 %v270
        %828 = vmatpush1.msra.mxu0 %v269
        %829 = vmatprep.subr.mxu0 %v266
        %830 = vmatpush1.msra.mxu0 %v265
        %831 = vmatprep.subr.mxu0 %v262
        %832 = vmatpush1.msra.mxu0 %v261
        %833 = vmatprep.subr.mxu0 %v258
        %834 = vmatpush1.msra.mxu0 %v257
        %835 = vmatprep.subr.mxu0 %v254
        %836 = vmatpush1.msra.mxu0 %v253
        %837 = vmatprep.subr.mxu0 %v250
        %838 = vmatpush1.msra.mxu0 %v249
        %839 = vmatprep.subr.mxu0 %v374
        %840 = vmatpush2.msra.mxu0 %v373
        %841 = vmatprep.subr.mxu0 %v370
        %842 = vmatpush2.msra.mxu0 %v369
        %843 = vmatprep.subr.mxu0 %v366
        %844 = vmatpush2.msra.mxu0 %v365
        %845 = vmatprep.subr.mxu0 %v362
        %846 = vmatpush2.msra.mxu0 %v361
        %847 = vmatprep.subr.mxu0 %v358
        %848 = vmatpush2.msra.mxu0 %v357
        %849 = vmatprep.subr.mxu0 %v354
        %850 = vmatpush2.msra.mxu0 %v353
        %851 = vmatprep.subr.mxu0 %v350
        %852 = vmatpush2.msra.mxu0 %v349
        %853 = vmatprep.subr.mxu0 %v346
        %854 = vmatpush2.msra.mxu0 %v345
        %855 = vmatprep.subr.mxu0 %v342
        %856 = vmatpush2.msra.mxu0 %v341
        %857 = vmatprep.subr.mxu0 %v338
        %858 = vmatpush2.msra.mxu0 %v337
        %859 = vmatprep.subr.mxu0 %v334
        %860 = vmatpush2.msra.mxu0 %v333
        %861 = vmatprep.subr.mxu0 %v330
        %862 = vmatpush2.msra.mxu0 %v329
        %863 = vmatprep.subr.mxu0 %v326
        %864 = vmatpush2.msra.mxu0 %v325
        %865 = vmatprep.subr.mxu0 %v322
        %866 = vmatpush2.msra.mxu0 %v321
        %867 = vmatprep.subr.mxu0 %v318
        %868 = vmatpush2.msra.mxu0 %v317
        %869 = vmatprep.subr.mxu0 %v314
        %870 = vmatpush2.msra.mxu0 %v313
        %871 = vmatprep.mubr.f32.mxu0 %v732
        %872 = vmatmul.mubr.f32.gmra.mxu0 %v735
        %v873 = vpop.f32.mrf.mxu0
        %v874 = vadd.f32 %v389, %v873
        %v875 = vpop.f32.mrf.mxu0
        %v876 = vadd.f32 %v393, %v875
        %877 = vdwg.mxu0
        %v878 = vxor.u32 %v803, 2147483648
        %v879 = vmul.f32 %v878, 1.442695
        %v880 = vpow.pop %v879
        %v881 = vadd.f32 %v880, 1.0
        %v882 = vrcp.pop %v881
        %v883 = vmul.f32 1.0, %v882
        %v884 = vxor.u32 %v805, 2147483648
        %v885 = vmul.f32 %v884, 1.442695
        %v886 = vpow.pop %v885
        %v887 = vadd.f32 %v886, 1.0
        %v888 = vrcp.pop %v887
        %v889 = vmul.f32 1.0, %v888
        %v890 = vtanh.pop %v874
        %v891 = vxor.u32 %v876, 2147483648
        %v892 = vmul.f32 %v891, 1.442695
        %v893 = vpow.pop %v892
        %v894 = vadd.f32 %v893, 1.0
        %v895 = vrcp.pop %v894
        %v896 = vmul.f32 1.0, %v895
        %v897 = vmul.f32 %v889, %v730
        %v898 = vmul.f32 %v883, %v890
        %v899 = vadd.f32 %v897, %v898
        %v900 = vtanh.pop %v899
        %v901 = vmul.f32 %v896, %v900
        %902 = vst [vmem:[%s734] sm:$0xff] %v901
        %s903 = scalar_lea.vmem [#allocation2], 24
        %v904 = vld [vmem:[%s903] sm:$0xff]
        %905 = vmatprep.subr.mxu0 %v308
        %906 = vmatpush1.msra.mxu0 %v307
        %907 = vmatprep.subr.mxu0 %v304
        %908 = vmatpush1.msra.mxu0 %v303
        %909 = vmatprep.subr.mxu0 %v300
        %910 = vmatpush1.msra.mxu0 %v299
        %911 = vmatprep.subr.mxu0 %v296
        %912 = vmatpush1.msra.mxu0 %v295
        %913 = vmatprep.subr.mxu0 %v292
        %914 = vmatpush1.msra.mxu0 %v291
        %915 = vmatprep.subr.mxu0 %v288
        %916 = vmatpush1.msra.mxu0 %v287
        %917 = vmatprep.subr.mxu0 %v284
        %918 = vmatpush1.msra.mxu0 %v283
        %919 = vmatprep.subr.mxu0 %v280
        %920 = vmatpush1.msra.mxu0 %v279
        %921 = vmatprep.subr.mxu0 %v276
        %922 = vmatpush1.msra.mxu0 %v275
        %923 = vmatprep.subr.mxu0 %v272
        %924 = vmatpush1.msra.mxu0 %v271
        %925 = vmatprep.subr.mxu0 %v268
        %926 = vmatpush1.msra.mxu0 %v267
        %927 = vmatprep.subr.mxu0 %v264
        %928 = vmatpush1.msra.mxu0 %v263
        %929 = vmatprep.subr.mxu0 %v260
        %930 = vmatpush1.msra.mxu0 %v259
        %931 = vmatprep.subr.mxu0 %v256
        %932 = vmatpush1.msra.mxu0 %v255
        %933 = vmatprep.subr.mxu0 %v252
        %934 = vmatpush1.msra.mxu0 %v251
        %935 = vmatprep.subr.mxu0 %v248
        %936 = vmatpush1.msra.mxu0 %v247
        %937 = vmatprep.subr.mxu0 %v372
        %938 = vmatpush2.msra.mxu0 %v371
        %939 = vmatprep.subr.mxu0 %v368
        %940 = vmatpush2.msra.mxu0 %v367
        %941 = vmatprep.subr.mxu0 %v364
        %942 = vmatpush2.msra.mxu0 %v363
        %943 = vmatprep.subr.mxu0 %v360
        %944 = vmatpush2.msra.mxu0 %v359
        %945 = vmatprep.subr.mxu0 %v356
        %946 = vmatpush2.msra.mxu0 %v355
        %947 = vmatprep.subr.mxu0 %v352
        %948 = vmatpush2.msra.mxu0 %v351
        %949 = vmatprep.subr.mxu0 %v348
        %950 = vmatpush2.msra.mxu0 %v347
        %951 = vmatprep.subr.mxu0 %v344
        %952 = vmatpush2.msra.mxu0 %v343
        %953 = vmatprep.subr.mxu0 %v340
        %954 = vmatpush2.msra.mxu0 %v339
        %955 = vmatprep.subr.mxu0 %v336
        %956 = vmatpush2.msra.mxu0 %v335
        %957 = vmatprep.subr.mxu0 %v332
        %958 = vmatpush2.msra.mxu0 %v331
        %959 = vmatprep.subr.mxu0 %v328
        %960 = vmatpush2.msra.mxu0 %v327
        %961 = vmatprep.subr.mxu0 %v324
        %962 = vmatpush2.msra.mxu0 %v323
        %963 = vmatprep.subr.mxu0 %v320
        %964 = vmatpush2.msra.mxu0 %v319
        %965 = vmatprep.subr.mxu0 %v316
        %966 = vmatpush2.msra.mxu0 %v315
        %967 = vmatprep.subr.mxu0 %v312
        %968 = vmatpush2.msra.mxu0 %v311
        %969 = vmatprep.mubr.f32.mxu0 %v901
        %970 = vmatmul.mubr.f32.gmra.mxu0 %v904
        %v971 = vpop.f32.mrf.mxu0
        %v972 = vadd.f32 %v381, %v971
        %v973 = vpop.f32.mrf.mxu0
        %v974 = vadd.f32 %v385, %v973
        %975 = vdwg.mxu0
        %976 = vmatprep.subr.mxu0 %v310
        %977 = vmatpush1.msra.mxu0 %v309
        %978 = vmatprep.subr.mxu0 %v306
        %979 = vmatpush1.msra.mxu0 %v305
        %980 = vmatprep.subr.mxu0 %v302
        %981 = vmatpush1.msra.mxu0 %v301
        %982 = vmatprep.subr.mxu0 %v298
        %983 = vmatpush1.msra.mxu0 %v297
        %984 = vmatprep.subr.mxu0 %v294
        %985 = vmatpush1.msra.mxu0 %v293
        %986 = vmatprep.subr.mxu0 %v290
        %987 = vmatpush1.msra.mxu0 %v289
        %988 = vmatprep.subr.mxu0 %v286
        %989 = vmatpush1.msra.mxu0 %v285
        %990 = vmatprep.subr.mxu0 %v282
        %991 = vmatpush1.msra.mxu0 %v281
        %992 = vmatprep.subr.mxu0 %v278
        %993 = vmatpush1.msra.mxu0 %v277
        %994 = vmatprep.subr.mxu0 %v274
        %995 = vmatpush1.msra.mxu0 %v273
        %996 = vmatprep.subr.mxu0 %v270
        %997 = vmatpush1.msra.mxu0 %v269
        %998 = vmatprep.subr.mxu0 %v266
        %999 = vmatpush1.msra.mxu0 %v265
        %1000 = vmatprep.subr.mxu0 %v262
        %1001 = vmatpush1.msra.mxu0 %v261
        %1002 = vmatprep.subr.mxu0 %v258
        %1003 = vmatpush1.msra.mxu0 %v257
        %1004 = vmatprep.subr.mxu0 %v254
        %1005 = vmatpush1.msra.mxu0 %v253
        %1006 = vmatprep.subr.mxu0 %v250
        %1007 = vmatpush1.msra.mxu0 %v249
        %1008 = vmatprep.subr.mxu0 %v374
        %1009 = vmatpush2.msra.mxu0 %v373
        %1010 = vmatprep.subr.mxu0 %v370
        %1011 = vmatpush2.msra.mxu0 %v369
        %1012 = vmatprep.subr.mxu0 %v366
        %1013 = vmatpush2.msra.mxu0 %v365
        %1014 = vmatprep.subr.mxu0 %v362
        %1015 = vmatpush2.msra.mxu0 %v361
        %1016 = vmatprep.subr.mxu0 %v358
        %1017 = vmatpush2.msra.mxu0 %v357
        %1018 = vmatprep.subr.mxu0 %v354
        %1019 = vmatpush2.msra.mxu0 %v353
        %1020 = vmatprep.subr.mxu0 %v350
        %1021 = vmatpush2.msra.mxu0 %v349
        %1022 = vmatprep.subr.mxu0 %v346
        %1023 = vmatpush2.msra.mxu0 %v345
        %1024 = vmatprep.subr.mxu0 %v342
        %1025 = vmatpush2.msra.mxu0 %v341
        %1026 = vmatprep.subr.mxu0 %v338
        %1027 = vmatpush2.msra.mxu0 %v337
        %1028 = vmatprep.subr.mxu0 %v334
        %1029 = vmatpush2.msra.mxu0 %v333
        %1030 = vmatprep.subr.mxu0 %v330
        %1031 = vmatpush2.msra.mxu0 %v329
        %1032 = vmatprep.subr.mxu0 %v326
        %1033 = vmatpush2.msra.mxu0 %v325
        %1034 = vmatprep.subr.mxu0 %v322
        %1035 = vmatpush2.msra.mxu0 %v321
        %1036 = vmatprep.subr.mxu0 %v318
        %1037 = vmatpush2.msra.mxu0 %v317
        %1038 = vmatprep.subr.mxu0 %v314
        %1039 = vmatpush2.msra.mxu0 %v313
        %1040 = vmatprep.mubr.f32.mxu0 %v901
        %1041 = vmatmul.mubr.f32.gmra.mxu0 %v904
        %v1042 = vpop.f32.mrf.mxu0
        %v1043 = vadd.f32 %v389, %v1042
        %v1044 = vpop.f32.mrf.mxu0
        %v1045 = vadd.f32 %v393, %v1044
        %1046 = vdwg.mxu0
        %v1047 = vxor.u32 %v972, 2147483648
        %v1048 = vmul.f32 %v1047, 1.442695
        %v1049 = vpow.pop %v1048
        %v1050 = vadd.f32 %v1049, 1.0
        %v1051 = vrcp.pop %v1050
        %v1052 = vmul.f32 1.0, %v1051
        %v1053 = vxor.u32 %v974, 2147483648
        %v1054 = vmul.f32 %v1053, 1.442695
        %v1055 = vpow.pop %v1054
        %v1056 = vadd.f32 %v1055, 1.0
        %v1057 = vrcp.pop %v1056
        %v1058 = vmul.f32 1.0, %v1057
        %v1059 = vtanh.pop %v1043
        %v1060 = vxor.u32 %v1045, 2147483648
        %v1061 = vmul.f32 %v1060, 1.442695
        %v1062 = vpow.pop %v1061
        %v1063 = vadd.f32 %v1062, 1.0
        %v1064 = vrcp.pop %v1063
        %v1065 = vmul.f32 1.0, %v1064
        %v1066 = vmul.f32 %v1058, %v899
        %v1067 = vmul.f32 %v1052, %v1059
        %v1068 = vadd.f32 %v1066, %v1067
        %v1069 = vtanh.pop %v1068
        %v1070 = vmul.f32 %v1065, %v1069
        %1071 = vst [vmem:[%s903] sm:$0xff] %v1070
        %s1072 = scalar_lea.vmem [#allocation2], 32
        %v1073 = vld [vmem:[%s1072] sm:$0xff]
        %1074 = vmatprep.subr.mxu0 %v308
        %1075 = vmatpush1.msra.mxu0 %v307
        %1076 = vmatprep.subr.mxu0 %v304
        %1077 = vmatpush1.msra.mxu0 %v303
        %1078 = vmatprep.subr.mxu0 %v300
        %1079 = vmatpush1.msra.mxu0 %v299
        %1080 = vmatprep.subr.mxu0 %v296
        %1081 = vmatpush1.msra.mxu0 %v295
        %1082 = vmatprep.subr.mxu0 %v292
        %1083 = vmatpush1.msra.mxu0 %v291
        %1084 = vmatprep.subr.mxu0 %v288
        %1085 = vmatpush1.msra.mxu0 %v287
        %1086 = vmatprep.subr.mxu0 %v284
        %1087 = vmatpush1.msra.mxu0 %v283
        %1088 = vmatprep.subr.mxu0 %v280
        %1089 = vmatpush1.msra.mxu0 %v279
        %1090 = vmatprep.subr.mxu0 %v276
        %1091 = vmatpush1.msra.mxu0 %v275
        %1092 = vmatprep.subr.mxu0 %v272
        %1093 = vmatpush1.msra.mxu0 %v271
        %1094 = vmatprep.subr.mxu0 %v268
        %1095 = vmatpush1.msra.mxu0 %v267
        %1096 = vmatprep.subr.mxu0 %v264
        %1097 = vmatpush1.msra.mxu0 %v263
        %1098 = vmatprep.subr.mxu0 %v260
        %1099 = vmatpush1.msra.mxu0 %v259
        %1100 = vmatprep.subr.mxu0 %v256
        %1101 = vmatpush1.msra.mxu0 %v255
        %1102 = vmatprep.subr.mxu0 %v252
        %1103 = vmatpush1.msra.mxu0 %v251
        %1104 = vmatprep.subr.mxu0 %v248
        %1105 = vmatpush1.msra.mxu0 %v247
        %1106 = vmatprep.subr.mxu0 %v372
        %1107 = vmatpush2.msra.mxu0 %v371
        %1108 = vmatprep.subr.mxu0 %v368
        %1109 = vmatpush2.msra.mxu0 %v367
        %1110 = vmatprep.subr.mxu0 %v364
        %1111 = vmatpush2.msra.mxu0 %v363
        %1112 = vmatprep.subr.mxu0 %v360
        %1113 = vmatpush2.msra.mxu0 %v359
        %1114 = vmatprep.subr.mxu0 %v356
        %1115 = vmatpush2.msra.mxu0 %v355
        %1116 = vmatprep.subr.mxu0 %v352
        %1117 = vmatpush2.msra.mxu0 %v351
        %1118 = vmatprep.subr.mxu0 %v348
        %1119 = vmatpush2.msra.mxu0 %v347
        %1120 = vmatprep.subr.mxu0 %v344
        %1121 = vmatpush2.msra.mxu0 %v343
        %1122 = vmatprep.subr.mxu0 %v340
        %1123 = vmatpush2.msra.mxu0 %v339
        %1124 = vmatprep.subr.mxu0 %v336
        %1125 = vmatpush2.msra.mxu0 %v335
        %1126 = vmatprep.subr.mxu0 %v332
        %1127 = vmatpush2.msra.mxu0 %v331
        %1128 = vmatprep.subr.mxu0 %v328
        %1129 = vmatpush2.msra.mxu0 %v327
        %1130 = vmatprep.subr.mxu0 %v324
        %1131 = vmatpush2.msra.mxu0 %v323
        %1132 = vmatprep.subr.mxu0 %v320
        %1133 = vmatpush2.msra.mxu0 %v319
        %1134 = vmatprep.subr.mxu0 %v316
        %1135 = vmatpush2.msra.mxu0 %v315
        %1136 = vmatprep.subr.mxu0 %v312
        %1137 = vmatpush2.msra.mxu0 %v311
        %1138 = vmatprep.mubr.f32.mxu0 %v1070
        %1139 = vmatmul.mubr.f32.gmra.mxu0 %v1073
        %v1140 = vpop.f32.mrf.mxu0
        %v1141 = vadd.f32 %v381, %v1140
        %v1142 = vpop.f32.mrf.mxu0
        %v1143 = vadd.f32 %v385, %v1142
        %1144 = vdwg.mxu0
        %1145 = vmatprep.subr.mxu0 %v310
        %1146 = vmatpush1.msra.mxu0 %v309
        %1147 = vmatprep.subr.mxu0 %v306
        %1148 = vmatpush1.msra.mxu0 %v305
        %1149 = vmatprep.subr.mxu0 %v302
        %1150 = vmatpush1.msra.mxu0 %v301
        %1151 = vmatprep.subr.mxu0 %v298
        %1152 = vmatpush1.msra.mxu0 %v297
        %1153 = vmatprep.subr.mxu0 %v294
        %1154 = vmatpush1.msra.mxu0 %v293
        %1155 = vmatprep.subr.mxu0 %v290
        %1156 = vmatpush1.msra.mxu0 %v289
        %1157 = vmatprep.subr.mxu0 %v286
        %1158 = vmatpush1.msra.mxu0 %v285
        %1159 = vmatprep.subr.mxu0 %v282
        %1160 = vmatpush1.msra.mxu0 %v281
        %1161 = vmatprep.subr.mxu0 %v278
        %1162 = vmatpush1.msra.mxu0 %v277
        %1163 = vmatprep.subr.mxu0 %v274
        %1164 = vmatpush1.msra.mxu0 %v273
        %1165 = vmatprep.subr.mxu0 %v270
        %1166 = vmatpush1.msra.mxu0 %v269
        %1167 = vmatprep.subr.mxu0 %v266
        %1168 = vmatpush1.msra.mxu0 %v265
        %1169 = vmatprep.subr.mxu0 %v262
        %1170 = vmatpush1.msra.mxu0 %v261
        %1171 = vmatprep.subr.mxu0 %v258
        %1172 = vmatpush1.msra.mxu0 %v257
        %1173 = vmatprep.subr.mxu0 %v254
        %1174 = vmatpush1.msra.mxu0 %v253
        %1175 = vmatprep.subr.mxu0 %v250
        %1176 = vmatpush1.msra.mxu0 %v249
        %1177 = vmatprep.subr.mxu0 %v374
        %1178 = vmatpush2.msra.mxu0 %v373
        %1179 = vmatprep.subr.mxu0 %v370
        %1180 = vmatpush2.msra.mxu0 %v369
        %1181 = vmatprep.subr.mxu0 %v366
        %1182 = vmatpush2.msra.mxu0 %v365
        %1183 = vmatprep.subr.mxu0 %v362
        %1184 = vmatpush2.msra.mxu0 %v361
        %1185 = vmatprep.subr.mxu0 %v358
        %1186 = vmatpush2.msra.mxu0 %v357
        %1187 = vmatprep.subr.mxu0 %v354
        %1188 = vmatpush2.msra.mxu0 %v353
        %1189 = vmatprep.subr.mxu0 %v350
        %1190 = vmatpush2.msra.mxu0 %v349
        %1191 = vmatprep.subr.mxu0 %v346
        %1192 = vmatpush2.msra.mxu0 %v345
        %1193 = vmatprep.subr.mxu0 %v342
        %1194 = vmatpush2.msra.mxu0 %v341
        %1195 = vmatprep.subr.mxu0 %v338
        %1196 = vmatpush2.msra.mxu0 %v337
        %1197 = vmatprep.subr.mxu0 %v334
        %1198 = vmatpush2.msra.mxu0 %v333
        %1199 = vmatprep.subr.mxu0 %v330
        %1200 = vmatpush2.msra.mxu0 %v329
        %1201 = vmatprep.subr.mxu0 %v326
        %1202 = vmatpush2.msra.mxu0 %v325
        %1203 = vmatprep.subr.mxu0 %v322
        %1204 = vmatpush2.msra.mxu0 %v321
        %1205 = vmatprep.subr.mxu0 %v318
        %1206 = vmatpush2.msra.mxu0 %v317
        %1207 = vmatprep.subr.mxu0 %v314
        %1208 = vmatpush2.msra.mxu0 %v313
        %1209 = vmatprep.mubr.f32.mxu0 %v1070
        %1210 = vmatmul.mubr.f32.gmra.mxu0 %v1073
        %v1211 = vpop.f32.mrf.mxu0
        %v1212 = vadd.f32 %v389, %v1211
        %v1213 = vpop.f32.mrf.mxu0
        %v1214 = vadd.f32 %v393, %v1213
        %1215 = vdwg.mxu0
        %v1216 = vxor.u32 %v1141, 2147483648
        %v1217 = vmul.f32 %v1216, 1.442695
        %v1218 = vpow.pop %v1217
        %v1219 = vadd.f32 %v1218, 1.0
        %v1220 = vrcp.pop %v1219
        %v1221 = vmul.f32 1.0, %v1220
        %v1222 = vxor.u32 %v1143, 2147483648
        %v1223 = vmul.f32 %v1222, 1.442695
        %v1224 = vpow.pop %v1223
        %v1225 = vadd.f32 %v1224, 1.0
        %v1226 = vrcp.pop %v1225
        %v1227 = vmul.f32 1.0, %v1226
        %v1228 = vtanh.pop %v1212
        %v1229 = vxor.u32 %v1214, 2147483648
        %v1230 = vmul.f32 %v1229, 1.442695
        %v1231 = vpow.pop %v1230
        %v1232 = vadd.f32 %v1231, 1.0
        %v1233 = vrcp.pop %v1232
        %v1234 = vmul.f32 1.0, %v1233
        %v1235 = vmul.f32 %v1227, %v1068
        %v1236 = vmul.f32 %v1221, %v1228
        %v1237 = vadd.f32 %v1235, %v1236
        %v1238 = vtanh.pop %v1237
        %v1239 = vmul.f32 %v1234, %v1238
        %1240 = vst [vmem:[%s1072] sm:$0xff] %v1239
        %s1241 = scalar_lea.vmem [#allocation2], 40
        %v1242 = vld [vmem:[%s1241] sm:$0xff]
        %1243 = vmatprep.subr.mxu0 %v308
        %1244 = vmatpush1.msra.mxu0 %v307
        %1245 = vmatprep.subr.mxu0 %v304
        %1246 = vmatpush1.msra.mxu0 %v303
        %1247 = vmatprep.subr.mxu0 %v300
        %1248 = vmatpush1.msra.mxu0 %v299
        %1249 = vmatprep.subr.mxu0 %v296
        %1250 = vmatpush1.msra.mxu0 %v295
        %1251 = vmatprep.subr.mxu0 %v292
        %1252 = vmatpush1.msra.mxu0 %v291
        %1253 = vmatprep.subr.mxu0 %v288
        %1254 = vmatpush1.msra.mxu0 %v287
        %1255 = vmatprep.subr.mxu0 %v284
        %1256 = vmatpush1.msra.mxu0 %v283
        %1257 = vmatprep.subr.mxu0 %v280
        %1258 = vmatpush1.msra.mxu0 %v279
        %1259 = vmatprep.subr.mxu0 %v276
        %1260 = vmatpush1.msra.mxu0 %v275
        %1261 = vmatprep.subr.mxu0 %v272
        %1262 = vmatpush1.msra.mxu0 %v271
        %1263 = vmatprep.subr.mxu0 %v268
        %1264 = vmatpush1.msra.mxu0 %v267
        %1265 = vmatprep.subr.mxu0 %v264
        %1266 = vmatpush1.msra.mxu0 %v263
        %1267 = vmatprep.subr.mxu0 %v260
        %1268 = vmatpush1.msra.mxu0 %v259
        %1269 = vmatprep.subr.mxu0 %v256
        %1270 = vmatpush1.msra.mxu0 %v255
        %1271 = vmatprep.subr.mxu0 %v252
        %1272 = vmatpush1.msra.mxu0 %v251
        %1273 = vmatprep.subr.mxu0 %v248
        %1274 = vmatpush1.msra.mxu0 %v247
        %1275 = vmatprep.subr.mxu0 %v372
        %1276 = vmatpush2.msra.mxu0 %v371
        %1277 = vmatprep.subr.mxu0 %v368
        %1278 = vmatpush2.msra.mxu0 %v367
        %1279 = vmatprep.subr.mxu0 %v364
        %1280 = vmatpush2.msra.mxu0 %v363
        %1281 = vmatprep.subr.mxu0 %v360
        %1282 = vmatpush2.msra.mxu0 %v359
        %1283 = vmatprep.subr.mxu0 %v356
        %1284 = vmatpush2.msra.mxu0 %v355
        %1285 = vmatprep.subr.mxu0 %v352
        %1286 = vmatpush2.msra.mxu0 %v351
        %1287 = vmatprep.subr.mxu0 %v348
        %1288 = vmatpush2.msra.mxu0 %v347
        %1289 = vmatprep.subr.mxu0 %v344
        %1290 = vmatpush2.msra.mxu0 %v343
        %1291 = vmatprep.subr.mxu0 %v340
        %1292 = vmatpush2.msra.mxu0 %v339
        %1293 = vmatprep.subr.mxu0 %v336
        %1294 = vmatpush2.msra.mxu0 %v335
        %1295 = vmatprep.subr.mxu0 %v332
        %1296 = vmatpush2.msra.mxu0 %v331
        %1297 = vmatprep.subr.mxu0 %v328
        %1298 = vmatpush2.msra.mxu0 %v327
        %1299 = vmatprep.subr.mxu0 %v324
        %1300 = vmatpush2.msra.mxu0 %v323
        %1301 = vmatprep.subr.mxu0 %v320
        %1302 = vmatpush2.msra.mxu0 %v319
        %1303 = vmatprep.subr.mxu0 %v316
        %1304 = vmatpush2.msra.mxu0 %v315
        %1305 = vmatprep.subr.mxu0 %v312
        %1306 = vmatpush2.msra.mxu0 %v311
        %1307 = vmatprep.mubr.f32.mxu0 %v1239
        %1308 = vmatmul.mubr.f32.gmra.mxu0 %v1242
        %v1309 = vpop.f32.mrf.mxu0
        %v1310 = vadd.f32 %v381, %v1309
        %v1311 = vpop.f32.mrf.mxu0
        %v1312 = vadd.f32 %v385, %v1311
        %1313 = vdwg.mxu0
        %1314 = vmatprep.subr.mxu0 %v310
        %1315 = vmatpush1.msra.mxu0 %v309
        %1316 = vmatprep.subr.mxu0 %v306
        %1317 = vmatpush1.msra.mxu0 %v305
        %1318 = vmatprep.subr.mxu0 %v302
        %1319 = vmatpush1.msra.mxu0 %v301
        %1320 = vmatprep.subr.mxu0 %v298
        %1321 = vmatpush1.msra.mxu0 %v297
        %1322 = vmatprep.subr.mxu0 %v294
        %1323 = vmatpush1.msra.mxu0 %v293
        %1324 = vmatprep.subr.mxu0 %v290
        %1325 = vmatpush1.msra.mxu0 %v289
        %1326 = vmatprep.subr.mxu0 %v286
        %1327 = vmatpush1.msra.mxu0 %v285
        %1328 = vmatprep.subr.mxu0 %v282
        %1329 = vmatpush1.msra.mxu0 %v281
        %1330 = vmatprep.subr.mxu0 %v278
        %1331 = vmatpush1.msra.mxu0 %v277
        %1332 = vmatprep.subr.mxu0 %v274
        %1333 = vmatpush1.msra.mxu0 %v273
        %1334 = vmatprep.subr.mxu0 %v270
        %1335 = vmatpush1.msra.mxu0 %v269
        %1336 = vmatprep.subr.mxu0 %v266
        %1337 = vmatpush1.msra.mxu0 %v265
        %1338 = vmatprep.subr.mxu0 %v262
        %1339 = vmatpush1.msra.mxu0 %v261
        %1340 = vmatprep.subr.mxu0 %v258
        %1341 = vmatpush1.msra.mxu0 %v257
        %1342 = vmatprep.subr.mxu0 %v254
        %1343 = vmatpush1.msra.mxu0 %v253
        %1344 = vmatprep.subr.mxu0 %v250
        %1345 = vmatpush1.msra.mxu0 %v249
        %1346 = vmatprep.subr.mxu0 %v374
        %1347 = vmatpush2.msra.mxu0 %v373
        %1348 = vmatprep.subr.mxu0 %v370
        %1349 = vmatpush2.msra.mxu0 %v369
        %1350 = vmatprep.subr.mxu0 %v366
        %1351 = vmatpush2.msra.mxu0 %v365
        %1352 = vmatprep.subr.mxu0 %v362
        %1353 = vmatpush2.msra.mxu0 %v361
        %1354 = vmatprep.subr.mxu0 %v358
        %1355 = vmatpush2.msra.mxu0 %v357
        %1356 = vmatprep.subr.mxu0 %v354
        %1357 = vmatpush2.msra.mxu0 %v353
        %1358 = vmatprep.subr.mxu0 %v350
        %1359 = vmatpush2.msra.mxu0 %v349
        %1360 = vmatprep.subr.mxu0 %v346
        %1361 = vmatpush2.msra.mxu0 %v345
        %1362 = vmatprep.subr.mxu0 %v342
        %1363 = vmatpush2.msra.mxu0 %v341
        %1364 = vmatprep.subr.mxu0 %v338
        %1365 = vmatpush2.msra.mxu0 %v337
        %1366 = vmatprep.subr.mxu0 %v334
        %1367 = vmatpush2.msra.mxu0 %v333
        %1368 = vmatprep.subr.mxu0 %v330
        %1369 = vmatpush2.msra.mxu0 %v329
        %1370 = vmatprep.subr.mxu0 %v326
        %1371 = vmatpush2.msra.mxu0 %v325
        %1372 = vmatprep.subr.mxu0 %v322
        %1373 = vmatpush2.msra.mxu0 %v321
        %1374 = vmatprep.subr.mxu0 %v318
        %1375 = vmatpush2.msra.mxu0 %v317
        %1376 = vmatprep.subr.mxu0 %v314
        %1377 = vmatpush2.msra.mxu0 %v313
        %1378 = vmatprep.mubr.f32.mxu0 %v1239
        %1379 = vmatmul.mubr.f32.gmra.mxu0 %v1242
        %v1380 = vpop.f32.mrf.mxu0
        %v1381 = vadd.f32 %v389, %v1380
        %v1382 = vpop.f32.mrf.mxu0
        %v1383 = vadd.f32 %v393, %v1382
        %1384 = vdwg.mxu0
        %v1385 = vxor.u32 %v1310, 2147483648
        %v1386 = vmul.f32 %v1385, 1.442695
        %v1387 = vpow.pop %v1386
        %v1388 = vadd.f32 %v1387, 1.0
        %v1389 = vrcp.pop %v1388
        %v1390 = vmul.f32 1.0, %v1389
        %v1391 = vxor.u32 %v1312, 2147483648
        %v1392 = vmul.f32 %v1391, 1.442695
        %v1393 = vpow.pop %v1392
        %v1394 = vadd.f32 %v1393, 1.0
        %v1395 = vrcp.pop %v1394
        %v1396 = vmul.f32 1.0, %v1395
        %v1397 = vtanh.pop %v1381
        %v1398 = vxor.u32 %v1383, 2147483648
        %v1399 = vmul.f32 %v1398, 1.442695
        %v1400 = vpow.pop %v1399
        %v1401 = vadd.f32 %v1400, 1.0
        %v1402 = vrcp.pop %v1401
        %v1403 = vmul.f32 1.0, %v1402
        %v1404 = vmul.f32 %v1396, %v1237
        %v1405 = vmul.f32 %v1390, %v1397
        %v1406 = vadd.f32 %v1404, %v1405
        %v1407 = vtanh.pop %v1406
        %v1408 = vmul.f32 %v1403, %v1407
        %1409 = vst [vmem:[%s1241] sm:$0xff] %v1408
        %s1410 = scalar_lea.vmem [#allocation2], 48
        %v1411 = vld [vmem:[%s1410] sm:$0xff]
        %1412 = vmatprep.subr.mxu0 %v308
        %1413 = vmatpush1.msra.mxu0 %v307
        %1414 = vmatprep.subr.mxu0 %v304
        %1415 = vmatpush1.msra.mxu0 %v303
        %1416 = vmatprep.subr.mxu0 %v300
        %1417 = vmatpush1.msra.mxu0 %v299
        %1418 = vmatprep.subr.mxu0 %v296
        %1419 = vmatpush1.msra.mxu0 %v295
        %1420 = vmatprep.subr.mxu0 %v292
        %1421 = vmatpush1.msra.mxu0 %v291
        %1422 = vmatprep.subr.mxu0 %v288
        %1423 = vmatpush1.msra.mxu0 %v287
        %1424 = vmatprep.subr.mxu0 %v284
        %1425 = vmatpush1.msra.mxu0 %v283
        %1426 = vmatprep.subr.mxu0 %v280
        %1427 = vmatpush1.msra.mxu0 %v279
        %1428 = vmatprep.subr.mxu0 %v276
        %1429 = vmatpush1.msra.mxu0 %v275
        %1430 = vmatprep.subr.mxu0 %v272
        %1431 = vmatpush1.msra.mxu0 %v271
        %1432 = vmatprep.subr.mxu0 %v268
        %1433 = vmatpush1.msra.mxu0 %v267
        %1434 = vmatprep.subr.mxu0 %v264
        %1435 = vmatpush1.msra.mxu0 %v263
        %1436 = vmatprep.subr.mxu0 %v260
        %1437 = vmatpush1.msra.mxu0 %v259
        %1438 = vmatprep.subr.mxu0 %v256
        %1439 = vmatpush1.msra.mxu0 %v255
        %1440 = vmatprep.subr.mxu0 %v252
        %1441 = vmatpush1.msra.mxu0 %v251
        %1442 = vmatprep.subr.mxu0 %v248
        %1443 = vmatpush1.msra.mxu0 %v247
        %1444 = vmatprep.subr.mxu0 %v372
        %1445 = vmatpush2.msra.mxu0 %v371
        %1446 = vmatprep.subr.mxu0 %v368
        %1447 = vmatpush2.msra.mxu0 %v367
        %1448 = vmatprep.subr.mxu0 %v364
        %1449 = vmatpush2.msra.mxu0 %v363
        %1450 = vmatprep.subr.mxu0 %v360
        %1451 = vmatpush2.msra.mxu0 %v359
        %1452 = vmatprep.subr.mxu0 %v356
        %1453 = vmatpush2.msra.mxu0 %v355
        %1454 = vmatprep.subr.mxu0 %v352
        %1455 = vmatpush2.msra.mxu0 %v351
        %1456 = vmatprep.subr.mxu0 %v348
        %1457 = vmatpush2.msra.mxu0 %v347
        %1458 = vmatprep.subr.mxu0 %v344
        %1459 = vmatpush2.msra.mxu0 %v343
        %1460 = vmatprep.subr.mxu0 %v340
        %1461 = vmatpush2.msra.mxu0 %v339
        %1462 = vmatprep.subr.mxu0 %v336
        %1463 = vmatpush2.msra.mxu0 %v335
        %1464 = vmatprep.subr.mxu0 %v332
        %1465 = vmatpush2.msra.mxu0 %v331
        %1466 = vmatprep.subr.mxu0 %v328
        %1467 = vmatpush2.msra.mxu0 %v327
        %1468 = vmatprep.subr.mxu0 %v324
        %1469 = vmatpush2.msra.mxu0 %v323
        %1470 = vmatprep.subr.mxu0 %v320
        %1471 = vmatpush2.msra.mxu0 %v319
        %1472 = vmatprep.subr.mxu0 %v316
        %1473 = vmatpush2.msra.mxu0 %v315
        %1474 = vmatprep.subr.mxu0 %v312
        %1475 = vmatpush2.msra.mxu0 %v311
        %1476 = vmatprep.mubr.f32.mxu0 %v1408
        %1477 = vmatmul.mubr.f32.gmra.mxu0 %v1411
        %v1478 = vpop.f32.mrf.mxu0
        %v1479 = vadd.f32 %v381, %v1478
        %v1480 = vpop.f32.mrf.mxu0
        %v1481 = vadd.f32 %v385, %v1480
        %1482 = vdwg.mxu0
        %1483 = vmatprep.subr.mxu0 %v310
        %1484 = vmatpush1.msra.mxu0 %v309
        %1485 = vmatprep.subr.mxu0 %v306
        %1486 = vmatpush1.msra.mxu0 %v305
        %1487 = vmatprep.subr.mxu0 %v302
        %1488 = vmatpush1.msra.mxu0 %v301
        %1489 = vmatprep.subr.mxu0 %v298
        %1490 = vmatpush1.msra.mxu0 %v297
        %1491 = vmatprep.subr.mxu0 %v294
        %1492 = vmatpush1.msra.mxu0 %v293
        %1493 = vmatprep.subr.mxu0 %v290
        %1494 = vmatpush1.msra.mxu0 %v289
        %1495 = vmatprep.subr.mxu0 %v286
        %1496 = vmatpush1.msra.mxu0 %v285
        %1497 = vmatprep.subr.mxu0 %v282
        %1498 = vmatpush1.msra.mxu0 %v281
        %1499 = vmatprep.subr.mxu0 %v278
        %1500 = vmatpush1.msra.mxu0 %v277
        %1501 = vmatprep.subr.mxu0 %v274
        %1502 = vmatpush1.msra.mxu0 %v273
        %1503 = vmatprep.subr.mxu0 %v270
        %1504 = vmatpush1.msra.mxu0 %v269
        %1505 = vmatprep.subr.mxu0 %v266
        %1506 = vmatpush1.msra.mxu0 %v265
        %1507 = vmatprep.subr.mxu0 %v262
        %1508 = vmatpush1.msra.mxu0 %v261
        %1509 = vmatprep.subr.mxu0 %v258
        %1510 = vmatpush1.msra.mxu0 %v257
        %1511 = vmatprep.subr.mxu0 %v254
        %1512 = vmatpush1.msra.mxu0 %v253
        %1513 = vmatprep.subr.mxu0 %v250
        %1514 = vmatpush1.msra.mxu0 %v249
        %1515 = vmatprep.subr.mxu0 %v374
        %1516 = vmatpush2.msra.mxu0 %v373
        %1517 = vmatprep.subr.mxu0 %v370
        %1518 = vmatpush2.msra.mxu0 %v369
        %1519 = vmatprep.subr.mxu0 %v366
        %1520 = vmatpush2.msra.mxu0 %v365
        %1521 = vmatprep.subr.mxu0 %v362
        %1522 = vmatpush2.msra.mxu0 %v361
        %1523 = vmatprep.subr.mxu0 %v358
        %1524 = vmatpush2.msra.mxu0 %v357
        %1525 = vmatprep.subr.mxu0 %v354
        %1526 = vmatpush2.msra.mxu0 %v353
        %1527 = vmatprep.subr.mxu0 %v350
        %1528 = vmatpush2.msra.mxu0 %v349
        %1529 = vmatprep.subr.mxu0 %v346
        %1530 = vmatpush2.msra.mxu0 %v345
        %1531 = vmatprep.subr.mxu0 %v342
        %1532 = vmatpush2.msra.mxu0 %v341
        %1533 = vmatprep.subr.mxu0 %v338
        %1534 = vmatpush2.msra.mxu0 %v337
        %1535 = vmatprep.subr.mxu0 %v334
        %1536 = vmatpush2.msra.mxu0 %v333
        %1537 = vmatprep.subr.mxu0 %v330
        %1538 = vmatpush2.msra.mxu0 %v329
        %1539 = vmatprep.subr.mxu0 %v326
        %1540 = vmatpush2.msra.mxu0 %v325
        %1541 = vmatprep.subr.mxu0 %v322
        %1542 = vmatpush2.msra.mxu0 %v321
        %1543 = vmatprep.subr.mxu0 %v318
        %1544 = vmatpush2.msra.mxu0 %v317
        %1545 = vmatprep.subr.mxu0 %v314
        %1546 = vmatpush2.msra.mxu0 %v313
        %1547 = vmatprep.mubr.f32.mxu0 %v1408
        %1548 = vmatmul.mubr.f32.gmra.mxu0 %v1411
        %v1549 = vpop.f32.mrf.mxu0
        %v1550 = vadd.f32 %v389, %v1549
        %v1551 = vpop.f32.mrf.mxu0
        %v1552 = vadd.f32 %v393, %v1551
        %1553 = vdwg.mxu0
        %v1554 = vxor.u32 %v1479, 2147483648
        %v1555 = vmul.f32 %v1554, 1.442695
        %v1556 = vpow.pop %v1555
        %v1557 = vadd.f32 %v1556, 1.0
        %v1558 = vrcp.pop %v1557
        %v1559 = vmul.f32 1.0, %v1558
        %v1560 = vxor.u32 %v1481, 2147483648
        %v1561 = vmul.f32 %v1560, 1.442695
        %v1562 = vpow.pop %v1561
        %v1563 = vadd.f32 %v1562, 1.0
        %v1564 = vrcp.pop %v1563
        %v1565 = vmul.f32 1.0, %v1564
        %v1566 = vtanh.pop %v1550
        %v1567 = vxor.u32 %v1552, 2147483648
        %v1568 = vmul.f32 %v1567, 1.442695
        %v1569 = vpow.pop %v1568
        %v1570 = vadd.f32 %v1569, 1.0
        %v1571 = vrcp.pop %v1570
        %v1572 = vmul.f32 1.0, %v1571
        %v1573 = vmul.f32 %v1565, %v1406
        %v1574 = vmul.f32 %v1559, %v1566
        %v1575 = vadd.f32 %v1573, %v1574
        %v1576 = vtanh.pop %v1575
        %v1577 = vmul.f32 %v1572, %v1576
        %1578 = vst [vmem:[%s1410] sm:$0xff] %v1577
        %s1579 = scalar_lea.vmem [#allocation2], 56
        %v1580 = vld [vmem:[%s1579] sm:$0xff]
        %1581 = vmatprep.subr.mxu0 %v308
        %1582 = vmatpush1.msra.mxu0 %v307
        %1583 = vmatprep.subr.mxu0 %v304
        %1584 = vmatpush1.msra.mxu0 %v303
        %1585 = vmatprep.subr.mxu0 %v300
        %1586 = vmatpush1.msra.mxu0 %v299
        %1587 = vmatprep.subr.mxu0 %v296
        %1588 = vmatpush1.msra.mxu0 %v295
        %1589 = vmatprep.subr.mxu0 %v292
        %1590 = vmatpush1.msra.mxu0 %v291
        %1591 = vmatprep.subr.mxu0 %v288
        %1592 = vmatpush1.msra.mxu0 %v287
        %1593 = vmatprep.subr.mxu0 %v284
        %1594 = vmatpush1.msra.mxu0 %v283
        %1595 = vmatprep.subr.mxu0 %v280
        %1596 = vmatpush1.msra.mxu0 %v279
        %1597 = vmatprep.subr.mxu0 %v276
        %1598 = vmatpush1.msra.mxu0 %v275
        %1599 = vmatprep.subr.mxu0 %v272
        %1600 = vmatpush1.msra.mxu0 %v271
        %1601 = vmatprep.subr.mxu0 %v268
        %1602 = vmatpush1.msra.mxu0 %v267
        %1603 = vmatprep.subr.mxu0 %v264
        %1604 = vmatpush1.msra.mxu0 %v263
        %1605 = vmatprep.subr.mxu0 %v260
        %1606 = vmatpush1.msra.mxu0 %v259
        %1607 = vmatprep.subr.mxu0 %v256
        %1608 = vmatpush1.msra.mxu0 %v255
        %1609 = vmatprep.subr.mxu0 %v252
        %1610 = vmatpush1.msra.mxu0 %v251
        %1611 = vmatprep.subr.mxu0 %v248
        %1612 = vmatpush1.msra.mxu0 %v247
        %1613 = vmatprep.subr.mxu0 %v372
        %1614 = vmatpush2.msra.mxu0 %v371
        %1615 = vmatprep.subr.mxu0 %v368
        %1616 = vmatpush2.msra.mxu0 %v367
        %1617 = vmatprep.subr.mxu0 %v364
        %1618 = vmatpush2.msra.mxu0 %v363
        %1619 = vmatprep.subr.mxu0 %v360
        %1620 = vmatpush2.msra.mxu0 %v359
        %1621 = vmatprep.subr.mxu0 %v356
        %1622 = vmatpush2.msra.mxu0 %v355
        %1623 = vmatprep.subr.mxu0 %v352
        %1624 = vmatpush2.msra.mxu0 %v351
        %1625 = vmatprep.subr.mxu0 %v348
        %1626 = vmatpush2.msra.mxu0 %v347
        %1627 = vmatprep.subr.mxu0 %v344
        %1628 = vmatpush2.msra.mxu0 %v343
        %1629 = vmatprep.subr.mxu0 %v340
        %1630 = vmatpush2.msra.mxu0 %v339
        %1631 = vmatprep.subr.mxu0 %v336
        %1632 = vmatpush2.msra.mxu0 %v335
        %1633 = vmatprep.subr.mxu0 %v332
        %1634 = vmatpush2.msra.mxu0 %v331
        %1635 = vmatprep.subr.mxu0 %v328
        %1636 = vmatpush2.msra.mxu0 %v327
        %1637 = vmatprep.subr.mxu0 %v324
        %1638 = vmatpush2.msra.mxu0 %v323
        %1639 = vmatprep.subr.mxu0 %v320
        %1640 = vmatpush2.msra.mxu0 %v319
        %1641 = vmatprep.subr.mxu0 %v316
        %1642 = vmatpush2.msra.mxu0 %v315
        %1643 = vmatprep.subr.mxu0 %v312
        %1644 = vmatpush2.msra.mxu0 %v311
        %1645 = vmatprep.mubr.f32.mxu0 %v1577
        %1646 = vmatmul.mubr.f32.gmra.mxu0 %v1580
        %v1647 = vpop.f32.mrf.mxu0
        %v1648 = vadd.f32 %v381, %v1647
        %v1649 = vpop.f32.mrf.mxu0
        %v1650 = vadd.f32 %v385, %v1649
        %1651 = vdwg.mxu0
        %1652 = vmatprep.subr.mxu0 %v310
        %1653 = vmatpush1.msra.mxu0 %v309
        %1654 = vmatprep.subr.mxu0 %v306
        %1655 = vmatpush1.msra.mxu0 %v305
        %1656 = vmatprep.subr.mxu0 %v302
        %1657 = vmatpush1.msra.mxu0 %v301
        %1658 = vmatprep.subr.mxu0 %v298
        %1659 = vmatpush1.msra.mxu0 %v297
        %1660 = vmatprep.subr.mxu0 %v294
        %1661 = vmatpush1.msra.mxu0 %v293
        %1662 = vmatprep.subr.mxu0 %v290
        %1663 = vmatpush1.msra.mxu0 %v289
        %1664 = vmatprep.subr.mxu0 %v286
        %1665 = vmatpush1.msra.mxu0 %v285
        %1666 = vmatprep.subr.mxu0 %v282
        %1667 = vmatpush1.msra.mxu0 %v281
        %1668 = vmatprep.subr.mxu0 %v278
        %1669 = vmatpush1.msra.mxu0 %v277
        %1670 = vmatprep.subr.mxu0 %v274
        %1671 = vmatpush1.msra.mxu0 %v273
        %1672 = vmatprep.subr.mxu0 %v270
        %1673 = vmatpush1.msra.mxu0 %v269
        %1674 = vmatprep.subr.mxu0 %v266
        %1675 = vmatpush1.msra.mxu0 %v265
        %1676 = vmatprep.subr.mxu0 %v262
        %1677 = vmatpush1.msra.mxu0 %v261
        %1678 = vmatprep.subr.mxu0 %v258
        %1679 = vmatpush1.msra.mxu0 %v257
        %1680 = vmatprep.subr.mxu0 %v254
        %1681 = vmatpush1.msra.mxu0 %v253
        %1682 = vmatprep.subr.mxu0 %v250
        %1683 = vmatpush1.msra.mxu0 %v249
        %1684 = vmatprep.subr.mxu0 %v374
        %1685 = vmatpush2.msra.mxu0 %v373
        %1686 = vmatprep.subr.mxu0 %v370
        %1687 = vmatpush2.msra.mxu0 %v369
        %1688 = vmatprep.subr.mxu0 %v366
        %1689 = vmatpush2.msra.mxu0 %v365
        %1690 = vmatprep.subr.mxu0 %v362
        %1691 = vmatpush2.msra.mxu0 %v361
        %1692 = vmatprep.subr.mxu0 %v358
        %1693 = vmatpush2.msra.mxu0 %v357
        %1694 = vmatprep.subr.mxu0 %v354
        %1695 = vmatpush2.msra.mxu0 %v353
        %1696 = vmatprep.subr.mxu0 %v350
        %1697 = vmatpush2.msra.mxu0 %v349
        %1698 = vmatprep.subr.mxu0 %v346
        %1699 = vmatpush2.msra.mxu0 %v345
        %1700 = vmatprep.subr.mxu0 %v342
        %1701 = vmatpush2.msra.mxu0 %v341
        %1702 = vmatprep.subr.mxu0 %v338
        %1703 = vmatpush2.msra.mxu0 %v337
        %1704 = vmatprep.subr.mxu0 %v334
        %1705 = vmatpush2.msra.mxu0 %v333
        %1706 = vmatprep.subr.mxu0 %v330
        %1707 = vmatpush2.msra.mxu0 %v329
        %1708 = vmatprep.subr.mxu0 %v326
        %1709 = vmatpush2.msra.mxu0 %v325
        %1710 = vmatprep.subr.mxu0 %v322
        %1711 = vmatpush2.msra.mxu0 %v321
        %1712 = vmatprep.subr.mxu0 %v318
        %1713 = vmatpush2.msra.mxu0 %v317
        %1714 = vmatprep.subr.mxu0 %v314
        %1715 = vmatpush2.msra.mxu0 %v313
        %1716 = vmatprep.mubr.f32.mxu0 %v1577
        %1717 = vmatmul.mubr.f32.gmra.mxu0 %v1580
        %v1718 = vpop.f32.mrf.mxu0
        %v1719 = vadd.f32 %v389, %v1718
        %v1720 = vpop.f32.mrf.mxu0
        %v1721 = vadd.f32 %v393, %v1720
        %1722 = vdwg.mxu0
        %v1723 = vxor.u32 %v1648, 2147483648
        %v1724 = vmul.f32 %v1723, 1.442695
        %v1725 = vpow.pop %v1724
        %v1726 = vadd.f32 %v1725, 1.0
        %v1727 = vrcp.pop %v1726
        %v1728 = vmul.f32 1.0, %v1727
        %v1729 = vxor.u32 %v1650, 2147483648
        %v1730 = vmul.f32 %v1729, 1.442695
        %v1731 = vpow.pop %v1730
        %v1732 = vadd.f32 %v1731, 1.0
        %v1733 = vrcp.pop %v1732
        %v1734 = vmul.f32 1.0, %v1733
        %v1735 = vtanh.pop %v1719
        %v1736 = vxor.u32 %v1721, 2147483648
        %v1737 = vmul.f32 %v1736, 1.442695
        %v1738 = vpow.pop %v1737
        %v1739 = vadd.f32 %v1738, 1.0
        %v1740 = vrcp.pop %v1739
        %v1741 = vmul.f32 1.0, %v1740
        %v1742 = vmul.f32 %v1734, %v1575
        %v1743 = vmul.f32 %v1728, %v1735
        %v1744 = vadd.f32 %v1742, %v1743
        %v1745 = vtanh.pop %v1744
        %v1746 = vmul.f32 %v1741, %v1745
        %1747 = vst [vmem:[%s1579] sm:$0xff] %v1746
        %p1748 = scmp.eq.s32.totalorder %s19, 1
        // Predicated region
        $region49: #{tpu_custom_call.1} parent=31 // pred_check
          %p1749 = pneg %p1748
        $region50: #{tpu_custom_call.1} parent=31 // pred_check_branch
          %1751 = sbr.rel (%p1749) target = $region52
        $region51: #{tpu_custom_call.1} parent=31 // pred_region
          %v1752 = vld [vmem:[#allocation2] sm:$0xff]
          %v1753 = vld [vmem:[#allocation2 + $0x8] sm:$0xff]
          %v1754 = vld [vmem:[#allocation2 + $0x10] sm:$0xff]
          %v1755 = vld [vmem:[#allocation2 + $0x18] sm:$0xff]
          %v1756 = vld [vmem:[#allocation2 + $0x20] sm:$0xff]
          %v1757 = vld [vmem:[#allocation2 + $0x28] sm:$0xff]
          %v1758 = vld [vmem:[#allocation2 + $0x30] sm:$0xff]
          %v1759 = vld [vmem:[#allocation2 + $0x38] sm:$0xff]
          %1760 = vst [vmem:[#allocation9] sm:$0xff] %v1752
          %1761 = vst [vmem:[#allocation9 + $0x8] sm:$0xff] %v1753
          %1762 = vst [vmem:[#allocation9 + $0x10] sm:$0xff] %v1754
          %1763 = vst [vmem:[#allocation9 + $0x18] sm:$0xff] %v1755
          %1764 = vst [vmem:[#allocation9 + $0x20] sm:$0xff] %v1756
          %1765 = vst [vmem:[#allocation9 + $0x28] sm:$0xff] %v1757
          %1766 = vst [vmem:[#allocation9 + $0x30] sm:$0xff] %v1758
          %1767 = vst [vmem:[#allocation9 + $0x38] sm:$0xff] %v1759
        $region52: #{tpu_custom_call.1} parent=31 // pred_fallthru
          _
        // Predicated region
        $region53: #{tpu_custom_call.1} parent=31 // pred_check
          %p1768 = pneg %p105
        $region54: #{tpu_custom_call.1} parent=31 // pred_check_branch
          %1770 = sbr.rel (%p1768) target = $region56
        $region55: #{tpu_custom_call.1} parent=31 // pred_region
          %s1772 = ssub.s32 1024, 1024
          %1773 = vsyncadd [#allocation5], %s1772
          %s1774 = sshll.u32 [#allocation9], 4
          %s1775 = int_to_ptr.vmem [resolvable:$true] %s1774
          %1780 = dma.vmem_to_hbm [thread:$0]  %s1775, 1024, %s3, [#allocation5], 128, 128, 8
        $region56: #{tpu_custom_call.1} parent=31 // pred_fallthru
          _
        // Predicated region
        $region57: #{tpu_custom_call.1} parent=31 // pred_check
          %p1781 = pneg %p105
        $region58: #{tpu_custom_call.1} parent=31 // pred_check_branch
          %1783 = sbr.rel (%p1781) target = $region60
        $region59: #{tpu_custom_call.1} parent=31 // pred_region
          %1784 = dma.done [#allocation5], 1024
        $region60: #{tpu_custom_call.1} parent=31 // pred_fallthru
          _
      $region32: #{tpu_custom_call.1} parent=5 // pred_fallthru
        _
      %p1785 = scmp.le.s32.totalorder 2, %s14
      // Predicated region
      $region61: #{tpu_custom_call.1} parent=5 // pred_check
        %p1786 = pneg %p1785
      $region62: #{tpu_custom_call.1} parent=5 // pred_check_branch
        %1788 = sbr.rel (%p1786) target = $region64
      $region63: #{tpu_custom_call.1} parent=5 // pred_region
        %s1789 = ssub.s32 %s14, 2
      $region64: #{tpu_custom_call.1} parent=5 // pred_fallthru
        _
    $region6: #{tpu_custom_call.1} parent=1 // loop_footer
      %s18 = sadd.s32 1, %s14
    $region7: #{tpu_custom_call.1} parent=1 // loop_footer_branch
      %13 = sbr.rel target = $region3
    $region8: #{tpu_custom_call.1} parent=1 // loop_exit
      _
    %1790 = vsyncpa [#allocation4], 1
    %s1791 = scalar_lea.sflag [#allocation4], 1
    %1792 = vsyncpa %s1791, 1
    %1793 = vsyncpa [#allocation7], 1
    %s1794 = scalar_lea.sflag [#allocation7], 1
    %1795 = vsyncpa %s1794, 1
    %1796 = vsyncpa [#allocation5], 1
    %s1797 = scalar_lea.sflag [#allocation5], 1
    %1798 = vsyncpa %s1797, 1

</llo_original>
